<compile_context>
chip_gen: v6e
topology: v6e:2x2x1
jax: 0.10.0
libtpu: 0.0.40
codegen_flags: <defaults>
</compile_context>

<pallas_src>
import jax
import jax.numpy as jnp
import numpy as np
from jax.experimental import pallas as pl
from jax.experimental.pallas import tpu as pltpu


# ----------------------------- Pallas kernel -------------------------------

def _edgeconv_kernel(xi_ref, xj_ref, w1_ref, w2_ref, b_ref, o_ref):
    """Per (N-tile, batch) grid step.

    xi_ref: (K, TN, C) gathered centers            [general path]
            (TN, C)    center tile (no K copy)     [centers_are_self path]
    xj_ref: (K, TN, C) gathered neighbors
    w1_ref: (C, Cout) = W1 - W2;  w2_ref: (C, Cout) = W2   (W = [W1; W2])
    b_ref:  (1, Cout) f32 bias
    o_ref:  (Cout, TN) lane-dense output block
    """
    K, TN, C = xj_ref.shape
    Cout = o_ref.shape[0]

    # Neighbor term: K fused into the MXU M-dim -> one big matmul, f32 acc.
    xj = xj_ref[...].reshape(K * TN, C)
    sj = jnp.dot(xj, w2_ref[...],
                 preferred_element_type=jnp.float32).reshape(K, TN, Cout)

    if len(xi_ref.shape) == 2:
        # Fast path: x_i is the center broadcast over K, so
        # max_k(x_i@W1' + x_j_k@W2) == x_i@W1' + max_k(x_j_k@W2).
        si = jnp.dot(xi_ref[...], w1_ref[...],
                     preferred_element_type=jnp.float32)            # (TN, Cout)
        m = si + jnp.max(sj, axis=0)                                 # (TN, Cout)
    else:
        # General path: per-k sum before the max.
        xi = xi_ref[...].reshape(K * TN, C)
        si = jnp.dot(xi, w1_ref[...],
                     preferred_element_type=jnp.float32).reshape(K, TN, Cout)
        m = jnp.max(si + sj, axis=0)                                 # (TN, Cout)

    # Bias + ReLU once, AFTER the K-max (ReLU is monotone, bias k-invariant).
    r = jnp.maximum(m + b_ref[...], 0.0)                             # (TN, Cout)

    # Lane-dense store: N on the lane axis.
    # TODO(synk): for very large K*Cout, chunk K with lax.fori_loop(unroll=True)
    # and a running max to bound the f32 intermediate instead of shrinking TN.
    o_ref[...] = r.T.astype(o_ref.dtype)                             # (Cout, TN)


# ----------------------------- VMEM tiling ----------------------------------

def _round_up(x, m):
    return -(-x // m) * m


def _vmem_budget_and_limit():
    """Generation-aware (tile_budget_bytes, vmem_limit_bytes)."""
    cap = 64 << 20                       # conservative default = v7x per-TC VMEM
    try:
        cap = int(getattr(pltpu.get_tpu_info(), "vmem_capacity_bytes", cap)) or cap
    except Exception:
        pass
    vmem_limit = min(cap * 3 // 4, 96 << 20)   # 48 MiB on v7x, 96 MiB on v5e/v6e
    budget = int(cap * 0.35)                   # ~22 MiB on v7x, ~45 MiB on v5e/v6e
    return budget, vmem_limit


def _pick_tile_n(N, K, C, Cout, itemsize, general, budget):
    """Largest multiple-of-128 divisor of N whose true VMEM working set
    (lane-padded blocks, double buffering, f32 intermediates) fits `budget`."""
    c_lane = _round_up(C, 128)        # last dim of input blocks lives on 128 lanes
    co_lane = _round_up(Cout, 128)    # last dim of the f32 intermediates
    co_sub = _round_up(Cout, 8)       # sublane dim of the (Cout, TN) output block

    def working_set(tn):
        xi_blk = (K if general else 1) * tn * c_lane * itemsize
        xj_blk = K * tn * c_lane * itemsize
        out_blk = co_sub * tn * itemsize
        pipelined = 2 * (xi_blk + xj_blk + out_blk)          # double-buffered DMA
        # f32 matmul outputs (si, sj) + max / bias / ReLU / transpose temps.
        inter = (K + (K if general else 1) + 3) * tn * co_lane * 4
        weights = 2 * (2 * _round_up(C, 8) * co_lane * itemsize + 8 * co_lane * 4)
        return pipelined + inter + weights

    for m in range(N // 128, 0, -1):
        tn = m * 128
        if N % tn == 0 and working_set(tn) <= budget:
            return tn
    # Nothing fit: smallest lane-aligned tile (may still spill at extreme K*C,
    # but never silently fall back to the full N).
    return 128


# ----------------------------- pallas_call wrapper ---------------------------

def edgeconv_pallas(x_i, x_j, w1, w2, bias, out_dtype=None):
    """x_j: (B, K, N, C); x_i: (B, K, N, C) or (B, N, C) [centers-are-self];
    w1, w2: (C, Cout); bias: (Cout,) f32.  Returns (B, Cout, N) in out_dtype."""
    B, K, N, C = x_j.shape
    Cout = w1.shape[1]
    general = (x_i.ndim == 4)
    out_dtype = out_dtype if out_dtype is not None else x_j.dtype
    n_orig = N

    # Pad N to a multiple of 128 -> lane-dense unmasked stores, legal tiling.
    pad = (-N) % 128
    if pad:
        x_j = jnp.pad(x_j, ((0, 0), (0, 0), (0, pad), (0, 0)))
        if general:
            x_i = jnp.pad(x_i, ((0, 0), (0, 0), (0, pad), (0, 0)))
        else:
            x_i = jnp.pad(x_i, ((0, 0), (0, pad), (0, 0)))
        N += pad

    itemsize = jnp.dtype(x_j.dtype).itemsize
    budget, vmem_limit = _vmem_budget_and_limit()
    TN = _pick_tile_n(N, K, C, Cout, itemsize, general, budget)
    n_tiles = N // TN

    if general:
        xi_spec = pl.BlockSpec((pl.Squeezed(), K, TN, C),
                               lambda nt, b: (b, 0, nt, 0))
        xi_flops = 2 * B * K * N * C * Cout
    else:
        xi_spec = pl.BlockSpec((pl.Squeezed(), TN, C),
                               lambda nt, b: (b, nt, 0))
        xi_flops = 2 * B * N * C * Cout
    flops = int(xi_flops + 2 * B * K * N * C * Cout)
    bytes_accessed = int(
        (x_i.size + x_j.size) * itemsize
        + (w1.size + w2.size) * jnp.dtype(w1.dtype).itemsize
        + bias.size * 4
        + B * Cout * N * jnp.dtype(out_dtype).itemsize)

    out = pl.pallas_call(
        _edgeconv_kernel,
        out_shape=jax.ShapeDtypeStruct((B, Cout, N), out_dtype),
        grid_spec=pltpu.PrefetchScalarGridSpec(
            num_scalar_prefetch=0,
            # n_tiles (usually the larger parallel extent) leads so v7x's two
            # TensorCores shard it even when B is 1-2.
            grid=(n_tiles, B),
            in_specs=[
                xi_spec,
                pl.BlockSpec((pl.Squeezed(), K, TN, C), lambda nt, b: (b, 0, nt, 0)),
                pl.BlockSpec((C, Cout), lambda nt, b: (0, 0)),
                pl.BlockSpec((C, Cout), lambda nt, b: (0, 0)),
                pl.BlockSpec((1, Cout), lambda nt, b: (0, 0)),
            ],
            out_specs=pl.BlockSpec((pl.Squeezed(), Cout, TN),
                                   lambda nt, b: (b, 0, nt)),
        ),
        compiler_params=pltpu.CompilerParams(
            dimension_semantics=("parallel", "parallel"),
            vmem_limit_bytes=vmem_limit),
        cost_estimate=pl.CostEstimate(flops=flops, transcendentals=0,
                                      bytes_accessed=bytes_accessed),
    )(x_i, x_j, w1, w2, bias.reshape(1, Cout))

    if pad:
        out = out[:, :, :n_orig]
    return out


# ------------------------------- glue (JAX) ---------------------------------

def batched_index_select(x_sq, idx):
    """x_sq: (B, C, N), idx: (B, N, K) int -> (B, C, N, K).  (reference helper)"""
    return jax.vmap(lambda xb, ib: xb[:, ib])(x_sq, idx)


def edge_conv2d(x, edge_index, w, b, y=None, *, centers_are_self=False,
                compute_dtype=jnp.bfloat16):
    """x: (B, C, N, 1), edge_index: (2, B, N, K), w: (2C, Cout), b: (Cout,)
       -> (B, Cout, N, 1).

    centers_are_self=True skips the x_i gather entirely; only valid when
    edge_index[1][b, n, k] == n for all k (standard DGCNN KNN construction).
    compute_dtype is the dtype of the K-amplified gathered tensors / weights
    fed to the MXU; accumulation is f32 and the output keeps x.dtype.
    """
    B, C, N, _ = x.shape
    out_dtype = x.dtype
    x_nlc = jnp.transpose(x[..., 0], (0, 2, 1)).astype(compute_dtype)     # (B, N, C)
    src = x_nlc if y is None else \
        jnp.transpose(y[..., 0], (0, 2, 1)).astype(compute_dtype)

    # Gather neighbors directly into the kernel's (B, K, N, C) layout.
    gather = jax.vmap(lambda xb, ib: xb[ib])                # (N,C),(K,N) -> (K,N,C)
    idx_j = jnp.transpose(edge_index[0], (0, 2, 1))         # (B, K, N) neighbors
    x_j = gather(src, idx_j)                                # (B, K, N, C)

    if centers_are_self:
        x_i = x_nlc                                         # (B, N, C): no K-copy
    else:
        idx_i = jnp.transpose(edge_index[1], (0, 2, 1))     # (B, K, N) centers
        x_i = gather(x_nlc, idx_i)                          # (B, K, N, C)
    # TODO(synk): scalar-prefetch edge_index and gather x_j rows in-kernel via
    # manual DMA (memory_space=pl.ANY) to avoid the K-amplified HBM copy.

    # [x_i, x_j - x_i] @ W == x_i @ (W1 - W2) + x_j @ W2  (W = [W1; W2]).
    w1 = (w[:C] - w[C:]).astype(compute_dtype)
    w2 = w[C:].astype(compute_dtype)

    out = edgeconv_pallas(x_i, x_j, w1, w2, b.astype(jnp.float32),
                          out_dtype=out_dtype)              # (B, Cout, N)
    return out[..., None]                                   # (B, Cout, N, 1)


def edge_conv2d_ref(x, edge_index, w, b):
    """Pure-JAX reference matching the PyTorch forward (act='relu', norm=None)."""
    x_sq = x[..., 0]
    idx_j, idx_i = edge_index[0], edge_index[1]
    x_i = batched_index_select(x_sq, idx_i)
    x_j = batched_index_select(x_sq, idx_j)
    feat = jnp.concatenate([x_i, x_j - x_i], axis=1)        # (B, 2C, N, K)
    conv = jnp.einsum('bcnk,co->bonk', feat, w) + b[None, :, None, None]
    act = jnp.maximum(conv, 0.0)
    return jnp.max(act, axis=-1, keepdims=True)             # (B, Cout, N, 1)


# --------------------------------- main --------------------------------------

if __name__ == "__main__":
    B, C, N, K, Cout = 2, 4, 16, 8, 8                       # in_channels=4, out_channels=8

    key = jax.random.PRNGKey(0)
    k1, k2, k3, k4 = jax.random.split(key, 4)
    x = jax.random.normal(k1, (B, C, N, 1), dtype=jnp.float32)
    edge_index = jax.random.randint(k2, (2, B, N, K), 0, N, dtype=jnp.int32)

    # Conv2d(2C, Cout, 1, bias=True): PyTorch weight (Cout, 2C, 1, 1) stored as (2C, Cout).
    w = jax.random.normal(k3, (2 * C, Cout), dtype=jnp.float32) * 0.1
    bias = jax.random.normal(k4, (Cout,), dtype=jnp.float32) * 0.1

    ref = edge_conv2d_ref(x, edge_index, w, bias)

    # 1) General path, f32 compute: exact check of the kernel math.
    out_f32 = jax.block_until_ready(
        edge_conv2d(x, edge_index, w, bias, compute_dtype=jnp.float32))
    np.testing.assert_allclose(np.asarray(out_f32), np.asarray(ref),
                               rtol=1e-5, atol=1e-5)
    assert out_f32.shape == (B, Cout, N, 1)

    # 2) General path, default bf16 compute (f32 accumulation): loose tol.
    out_bf16 = jax.block_until_ready(edge_conv2d(x, edge_index, w, bias))
    np.testing.assert_allclose(np.asarray(out_bf16.astype(jnp.float32)),
                               np.asarray(ref), rtol=3e-2, atol=3e-2)

    # 3) Fast path: edge_index[1] is the trivial center broadcast (DGCNN KNN).
    centers = jnp.broadcast_to(jnp.arange(N, dtype=jnp.int32)[None, :, None],
                               (B, N, K))
    edge_index_knn = jnp.stack([edge_index[0], centers], axis=0)
    ref_knn = edge_conv2d_ref(x, edge_index_knn, w, bias)
    out_knn = jax.block_until_ready(
        edge_conv2d(x, edge_index_knn, w, bias, centers_are_self=True))
    np.testing.assert_allclose(np.asarray(out_knn.astype(jnp.float32)),
                               np.asarray(ref_knn), rtol=3e-2, atol=3e-2)

    print("KERNEL_OK")
</pallas_src>

<mosaic_0001>
module attributes {stable_mosaic.version = 11 : i64} {
  func.func @_edgeconv_kernel(%arg0: i32, %arg1: i32, %arg2: memref<1x8x128x4xf32, #tpu.memory_space<vmem>>, %arg3: memref<1x8x128x4xf32, #tpu.memory_space<vmem>>, %arg4: memref<4x8xf32, #tpu.memory_space<vmem>>, %arg5: memref<4x8xf32, #tpu.memory_space<vmem>>, %arg6: memref<1x8xf32, #tpu.memory_space<vmem>>, %arg7: memref<1x8x128xf32, #tpu.memory_space<vmem>>) attributes {dimension_semantics = [#tpu.dimension_semantics<parallel>, #tpu.dimension_semantics<parallel>], iteration_bounds = array<i64: 1, 2>, scalar_prefetch = 0 : i64, scratch_operands = 0 : i64, tpu.core_type = #tpu.core_type<tc>, window_params = [{transform_indices = @transform_0, window_bounds = array<i64: 1, 8, 128, 4>}, {transform_indices = @transform_1, window_bounds = array<i64: 1, 8, 128, 4>}, {pipeline_mode = #tpu.pipeline_mode<synchronous>, transform_indices = @transform_2, window_bounds = array<i64: 4, 8>}, {pipeline_mode = #tpu.pipeline_mode<synchronous>, transform_indices = @transform_3, window_bounds = array<i64: 4, 8>}, {pipeline_mode = #tpu.pipeline_mode<synchronous>, transform_indices = @transform_4, window_bounds = array<i64: 1, 8>}, {transform_indices = @transform_5, window_bounds = array<i64: 1, 8, 128>}]} {
    %c0 = arith.constant 0 : index
    %c0_0 = arith.constant 0 : index
    %c0_1 = arith.constant 0 : index
    %c0_2 = arith.constant 0 : index
    %0 = vector.load %arg3[%c0, %c0_0, %c0_1, %c0_2] : memref<1x8x128x4xf32, #tpu.memory_space<vmem>>, vector<1x8x128x4xf32>
    %1 = vector.shape_cast %0 : vector<1x8x128x4xf32> to vector<8x128x4xf32>
    %2 = vector.shape_cast %1 : vector<8x128x4xf32> to vector<1024x4xf32>
    %c0_3 = arith.constant 0 : index
    %c0_4 = arith.constant 0 : index
    %3 = vector.load %arg5[%c0_3, %c0_4] : memref<4x8xf32, #tpu.memory_space<vmem>>, vector<4x8xf32>
    %cst = arith.constant dense<0.000000e+00> : vector<1024x8xf32>
    %4 = tpu.matmul %2, %3, %cst {dimension_numbers = #tpu.dot_dimension_numbers<[1], [0], [0], [1], [0, 0, 1, 1], [], []>} : vector<1024x4xf32>, vector<4x8xf32>, vector<1024x8xf32> -> vector<1024x8xf32>
    %5 = vector.shape_cast %4 : vector<1024x8xf32> to vector<8x128x8xf32>
    %c0_5 = arith.constant 0 : index
    %c0_6 = arith.constant 0 : index
    %c0_7 = arith.constant 0 : index
    %c0_8 = arith.constant 0 : index
    %6 = vector.load %arg2[%c0_5, %c0_6, %c0_7, %c0_8] : memref<1x8x128x4xf32, #tpu.memory_space<vmem>>, vector<1x8x128x4xf32>
    %7 = vector.shape_cast %6 : vector<1x8x128x4xf32> to vector<8x128x4xf32>
    %8 = vector.shape_cast %7 : vector<8x128x4xf32> to vector<1024x4xf32>
    %c0_9 = arith.constant 0 : index
    %c0_10 = arith.constant 0 : index
    %9 = vector.load %arg4[%c0_9, %c0_10] : memref<4x8xf32, #tpu.memory_space<vmem>>, vector<4x8xf32>
    %cst_11 = arith.constant dense<0.000000e+00> : vector<1024x8xf32>
    %10 = tpu.matmul %8, %9, %cst_11 {dimension_numbers = #tpu.dot_dimension_numbers<[1], [0], [0], [1], [0, 0, 1, 1], [], []>} : vector<1024x4xf32>, vector<4x8xf32>, vector<1024x8xf32> -> vector<1024x8xf32>
    %11 = vector.shape_cast %10 : vector<1024x8xf32> to vector<8x128x8xf32>
    %12 = arith.addf %11, %5 : vector<8x128x8xf32>
    %cst_12 = arith.constant dense<0xFF800000> : vector<128x8xf32>
    %13 = vector.multi_reduction <maximumf>, %12, %cst_12 [0] : vector<8x128x8xf32> to vector<128x8xf32>
    %c0_13 = arith.constant 0 : index
    %c0_14 = arith.constant 0 : index
    %14 = vector.load %arg6[%c0_13, %c0_14] : memref<1x8xf32, #tpu.memory_space<vmem>>, vector<1x8xf32>
    %15 = vector.broadcast %14 : vector<1x8xf32> to vector<128x8xf32>
    %16 = arith.addf %13, %15 : vector<128x8xf32>
    %cst_15 = arith.constant 0.000000e+00 : f32
    %17 = vector.broadcast %cst_15 : f32 to vector<128x8xf32>
    %18 = arith.maximumf %16, %17 : vector<128x8xf32>
    %19 = tpu.transpose %18, [1, 0] : vector<128x8xf32> -> vector<8x128xf32>
    %c0_16 = arith.constant 0 : index
    %c0_17 = arith.constant 0 : index
    %c0_18 = arith.constant 0 : index
    %20 = vector.load %arg7[%c0_16, %c0_17, %c0_18] : memref<1x8x128xf32, #tpu.memory_space<vmem>>, vector<1x8x128xf32>
    %21 = vector.shape_cast %20 : vector<1x8x128xf32> to vector<8x128xf32>
    %22 = vector.shape_cast %19 : vector<8x128xf32> to vector<1x8x128xf32>
    tpu.vector_store %arg7[%c0_16, %c0_17, %c0_18], %22 {strides = array<i32>} : memref<1x8x128xf32, #tpu.memory_space<vmem>>, vector<1x8x128xf32>,
    return
  }
  func.func @transform_0(%arg0: i32, %arg1: i32) -> (i32, i32, i32, i32) {
    %c0_i32 = arith.constant 0 : i32
    %c0_i32_0 = arith.constant 0 : i32
    %c0_i32_1 = arith.constant 0 : i32
    return %arg1, %c0_i32, %arg0, %c0_i32_0 : i32, i32, i32, i32
  }
  func.func @transform_1(%arg0: i32, %arg1: i32) -> (i32, i32, i32, i32) {
    %c0_i32 = arith.constant 0 : i32
    %c0_i32_0 = arith.constant 0 : i32
    %c0_i32_1 = arith.constant 0 : i32
    return %arg1, %c0_i32, %arg0, %c0_i32_0 : i32, i32, i32, i32
  }
  func.func @transform_2(%arg0: i32, %arg1: i32) -> (i32, i32) {
    %c0_i32 = arith.constant 0 : i32
    %c0_i32_0 = arith.constant 0 : i32
    %c0_i32_1 = arith.constant 0 : i32
    return %c0_i32, %c0_i32_0 : i32, i32
  }
  func.func @transform_3(%arg0: i32, %arg1: i32) -> (i32, i32) {
    %c0_i32 = arith.constant 0 : i32
    %c0_i32_0 = arith.constant 0 : i32
    %c0_i32_1 = arith.constant 0 : i32
    return %c0_i32, %c0_i32_0 : i32, i32
  }
  func.func @transform_4(%arg0: i32, %arg1: i32) -> (i32, i32) {
    %c0_i32 = arith.constant 0 : i32
    %c0_i32_0 = arith.constant 0 : i32
    %c0_i32_1 = arith.constant 0 : i32
    return %c0_i32, %c0_i32_0 : i32, i32
  }
  func.func @transform_5(%arg0: i32, %arg1: i32) -> (i32, i32, i32) {
    %c0_i32 = arith.constant 0 : i32
    %c0_i32_0 = arith.constant 0 : i32
    return %arg1, %c0_i32, %arg0 : i32, i32, i32
  }
}

</mosaic_0001>

<llo_original>
// kernel: tpu_custom_call.1
$region0: #{tpu_custom_call.1}
  #allocation0 [shape = 'u32[]', space=smem, size = 0x4, offset = 0x4, fixed_abs, tag = 'smem constant byte address 0x4 - core index']
  #allocation1 [shape = 'u32[144,128]{1,0:T(1,128)}', space=vmem, size = 0x12000, scoped, tag = 'internal scratch']
  %s0 = inlined_call_operand.vmem [shape: f32[2,8,128,4], index: 0, kind: input, shape index: {}]
  %s1 = inlined_call_operand.vmem [shape: f32[2,8,128,4], index: 1, kind: input, shape index: {}]
  %s2 = inlined_call_operand.vmem [shape: f32[4,8], index: 2, kind: input, shape index: {}]
  %s3 = inlined_call_operand.vmem [shape: f32[4,8], index: 3, kind: input, shape index: {}]
  %s4 = inlined_call_operand.vmem [shape: f32[1,8], index: 4, kind: input, shape index: {}]
  %s5 = inlined_call_operand.hbm [shape: f32[2,8,128], index: 5, kind: output, shape index: {}]
  %s6 = sld [smem:[#allocation0]]
  $region53: #{tpu_custom_call.1} parent=0
    _
  %s8 = ssub.s32 1, %s6
  %s9 = scalar_select 0, %s8, %s6
  $region1: #{tpu_custom_call.1} parent=0
    #allocation2 [shape = 'u8[8192]{0}', space=vmem, size = 0x2000, scoped, tag = 'output window, operand 0']
    #allocation3 [shape = 's32[2]{0}', space=sflag, size = 0x8, scoped, tag = 'scoped memory for tpu_custom_call.1']
    %10 = vsyncpa [#allocation3], 0
    %s11 = scalar_lea.sflag [#allocation3], 1
    %12 = vsyncpa %s11, 0
    loop: start=0, step=1, limit=4
    $region2: #{tpu_custom_call.1} parent=1 // loop_pre_header
      _
    $region3: #{tpu_custom_call.1} parent=1 // loop_header
      %s14 = sphi 0, %s18
      %p15 = scmp.ge.s32.totalorder %s14, 4
      %s21 = sphi 0, %s33
      %s22 = sphi 0, %s29
      %s23 = sphi 0, %s21
      %s24 = sphi 0, %s22
      %s25 = sphi 0, %s23
      %s26 = sphi 0, %s24
      %s38 = sphi 0, %s40
      %s41 = sphi 0, %s38
      %s42 = sphi 0, %s41
      %s58 = sphi 0, %s42
      %s66 = sphi 0, %s68
      %s69 = sphi 0, %s66
      %s70 = sphi 0, %s69
      %s86 = sphi 0, %s70
      %s90 = sphi 0, %s90
      %s92 = sphi 0, %s90
      %s93 = sphi 0, %s92
      %s107 = sphi 0, %s93
      %s111 = sphi 0, %s111
      %s113 = sphi 0, %s111
      %s114 = sphi 0, %s113
      %s128 = sphi 0, %s114
      %s132 = sphi 0, %s132
      %s134 = sphi 0, %s132
      %s135 = sphi 0, %s134
      %s149 = sphi 0, %s135
      %s157 = sphi 0, %s159
      %s160 = sphi 0, %s157
      %s161 = sphi 0, %s160
      %s177 = sphi 0, %s161
    $region4: #{tpu_custom_call.1} parent=1 // loop_header_branch
      %17 = sbr.rel (%p15) target = $region8
    $region5: #{tpu_custom_call.1} parent=1 // loop_body
      %s19 = ssub.s32 %s14, 1
      %s20 = ssub.s32 %s14, 2
      %s27 = sadd.s32 1, %s22
      %p28 = scmp.ge.s32.totalorder %s27, 2
      %s29 = scalar_select %p28, 0, %s27
      %s30 = sadd.s32 1, %s21
      %s31 = scalar_select %p28, %s30, %s21
      %p32 = scmp.ge.s32.totalorder %s31, 1
      %s33 = scalar_select %p32, 0, %s31
      %s34 = ssub.s32 %s22, %s29
      %s35 = ssub.s32 %s21, %s33
      %s36 = sor.u32 %s34, %s35
      %p37 = scmp.eq.s32.totalorder %s36, 0
      %s39 = sadd.s32 %s38, 1
      %s40 = scalar_select %p37, %s38, %s39
      %p43 = pneg %p37
      %p44 = scmp.eq.s32.totalorder %s14, 1
      %p45 = por %p43, %p44
      %p46 = scmp.ne.s32.totalorder %s38, %s41
      %p47 = scmp.eq.s32.totalorder %s14, 0
      %p48 = por %p46, %p47
      %p49 = scmp.ne.s32.totalorder %s38, %s41
      %p50 = scmp.eq.s32.totalorder %s19, 1
      %p51 = por %p49, %p50
      %p52 = scmp.ne.s32.totalorder %s41, %s42
      %p53 = scmp.eq.s32.totalorder %s19, 0
      %p54 = por %p52, %p53
      %p55 = scmp.ne.s32.totalorder %s41, %s42
      %p56 = scmp.eq.s32.totalorder %s20, 1
      %p57 = por %p55, %p56
      %p59 = scmp.ne.s32.totalorder %s42, %s58
      %p60 = scmp.eq.s32.totalorder %s20, 0
      %p61 = por %p59, %p60
      %s62 = ssub.s32 %s22, %s29
      %s63 = ssub.s32 %s21, %s33
      %s64 = sor.u32 %s62, %s63
      %p65 = scmp.eq.s32.totalorder %s64, 0
      %s67 = sadd.s32 %s66, 1
      %s68 = scalar_select %p65, %s66, %s67
      %p71 = pneg %p65
      %p72 = scmp.eq.s32.totalorder %s14, 1
      %p73 = por %p71, %p72
      %p74 = scmp.ne.s32.totalorder %s66, %s69
      %p75 = scmp.eq.s32.totalorder %s14, 0
      %p76 = por %p74, %p75
      %p77 = scmp.ne.s32.totalorder %s66, %s69
      %p78 = scmp.eq.s32.totalorder %s19, 1
      %p79 = por %p77, %p78
      %p80 = scmp.ne.s32.totalorder %s69, %s70
      %p81 = scmp.eq.s32.totalorder %s19, 0
      %p82 = por %p80, %p81
      %p83 = scmp.ne.s32.totalorder %s69, %s70
      %p84 = scmp.eq.s32.totalorder %s20, 1
      %p85 = por %p83, %p84
      %p87 = scmp.ne.s32.totalorder %s70, %s86
      %p88 = scmp.eq.s32.totalorder %s20, 0
      %p89 = por %p87, %p88
      %s91 = sadd.s32 %s90, 1
      %p94 = scmp.eq.s32.totalorder %s14, 1
      %p95 = scmp.ne.s32.totalorder %s90, %s92
      %p96 = scmp.eq.s32.totalorder %s14, 0
      %p97 = por %p95, %p96
      %p98 = scmp.ne.s32.totalorder %s90, %s92
      %p99 = scmp.eq.s32.totalorder %s19, 1
      %p100 = por %p98, %p99
      %p101 = scmp.ne.s32.totalorder %s92, %s93
      %p102 = scmp.eq.s32.totalorder %s19, 0
      %p103 = por %p101, %p102
      %p104 = scmp.ne.s32.totalorder %s92, %s93
      %p105 = scmp.eq.s32.totalorder %s20, 1
      %p106 = por %p104, %p105
      %p108 = scmp.ne.s32.totalorder %s93, %s107
      %p109 = scmp.eq.s32.totalorder %s20, 0
      %p110 = por %p108, %p109
      %s112 = sadd.s32 %s111, 1
      %p115 = scmp.eq.s32.totalorder %s14, 1
      %p116 = scmp.ne.s32.totalorder %s111, %s113
      %p117 = scmp.eq.s32.totalorder %s14, 0
      %p118 = por %p116, %p117
      %p119 = scmp.ne.s32.totalorder %s111, %s113
      %p120 = scmp.eq.s32.totalorder %s19, 1
      %p121 = por %p119, %p120
      %p122 = scmp.ne.s32.totalorder %s113, %s114
      %p123 = scmp.eq.s32.totalorder %s19, 0
      %p124 = por %p122, %p123
      %p125 = scmp.ne.s32.totalorder %s113, %s114
      %p126 = scmp.eq.s32.totalorder %s20, 1
      %p127 = por %p125, %p126
      %p129 = scmp.ne.s32.totalorder %s114, %s128
      %p130 = scmp.eq.s32.totalorder %s20, 0
      %p131 = por %p129, %p130
      %s133 = sadd.s32 %s132, 1
      %p136 = scmp.eq.s32.totalorder %s14, 1
      %p137 = scmp.ne.s32.totalorder %s132, %s134
      %p138 = scmp.eq.s32.totalorder %s14, 0
      %p139 = por %p137, %p138
      %p140 = scmp.ne.s32.totalorder %s132, %s134
      %p141 = scmp.eq.s32.totalorder %s19, 1
      %p142 = por %p140, %p141
      %p143 = scmp.ne.s32.totalorder %s134, %s135
      %p144 = scmp.eq.s32.totalorder %s19, 0
      %p145 = por %p143, %p144
      %p146 = scmp.ne.s32.totalorder %s134, %s135
      %p147 = scmp.eq.s32.totalorder %s20, 1
      %p148 = por %p146, %p147
      %p150 = scmp.ne.s32.totalorder %s135, %s149
      %p151 = scmp.eq.s32.totalorder %s20, 0
      %p152 = por %p150, %p151
      %s153 = ssub.s32 %s22, %s29
      %s154 = ssub.s32 %s21, %s33
      %s155 = sor.u32 %s153, %s154
      %p156 = scmp.eq.s32.totalorder %s155, 0
      %s158 = sadd.s32 %s157, 1
      %s159 = scalar_select %p156, %s157, %s158
      %p162 = pneg %p156
      %p163 = scmp.eq.s32.totalorder %s14, 1
      %p164 = por %p162, %p163
      %p165 = scmp.ne.s32.totalorder %s157, %s160
      %p166 = scmp.eq.s32.totalorder %s14, 0
      %p167 = por %p165, %p166
      %p168 = scmp.ne.s32.totalorder %s157, %s160
      %p169 = scmp.eq.s32.totalorder %s19, 1
      %p170 = por %p168, %p169
      %p171 = scmp.ne.s32.totalorder %s160, %s161
      %p172 = scmp.eq.s32.totalorder %s19, 0
      %p173 = por %p171, %p172
      %p174 = scmp.ne.s32.totalorder %s160, %s161
      %p175 = scmp.eq.s32.totalorder %s20, 1
      %p176 = por %p174, %p175
      %p178 = scmp.ne.s32.totalorder %s161, %s177
      %p179 = scmp.eq.s32.totalorder %s20, 0
      %p180 = por %p178, %p179
      %p181 = scmp.le.s32.totalorder 1, %s14
      %p182 = scmp.lt.s32.totalorder %s14, 3
      %p183 = pnand %p181, %p182
      %p184 = pneg %p183
      // Predicated region
      $region9: #{tpu_custom_call.1} parent=5 // pred_check
        _
      $region10: #{tpu_custom_call.1} parent=5 // pred_check_branch
        %186 = sbr.rel (%p183) target = $region12
      $region11: #{tpu_custom_call.1} parent=5 // pred_region
        %s187 = ssub.s32 %s14, 1
        // Predicated region
        $region13: #{tpu_custom_call.1} parent=11 // pred_check
          %p188 = pneg %p103
        $region14: #{tpu_custom_call.1} parent=11 // pred_check_branch
          %190 = sbr.rel (%p188) target = $region16
        $region15: #{tpu_custom_call.1} parent=11 // pred_region
          _
        $region16: #{tpu_custom_call.1} parent=11 // pred_fallthru
          _
        // Predicated region
        $region17: #{tpu_custom_call.1} parent=11 // pred_check
          %p191 = pneg %p124
        $region18: #{tpu_custom_call.1} parent=11 // pred_check_branch
          %193 = sbr.rel (%p191) target = $region20
        $region19: #{tpu_custom_call.1} parent=11 // pred_region
          _
        $region20: #{tpu_custom_call.1} parent=11 // pred_fallthru
          _
        // Predicated region
        $region21: #{tpu_custom_call.1} parent=11 // pred_check
          %p194 = pneg %p145
        $region22: #{tpu_custom_call.1} parent=11 // pred_check_branch
          %196 = sbr.rel (%p194) target = $region24
        $region23: #{tpu_custom_call.1} parent=11 // pred_region
          _
        $region24: #{tpu_custom_call.1} parent=11 // pred_fallthru
          _
      $region12: #{tpu_custom_call.1} parent=5 // pred_fallthru
        _
      %p197 = scmp.lt.s32.totalorder %s14, 2
      // Predicated region
      $region25: #{tpu_custom_call.1} parent=5 // pred_check
        %p198 = pneg %p197
      $region26: #{tpu_custom_call.1} parent=5 // pred_check_branch
        %200 = sbr.rel (%p198) target = $region28
      $region27: #{tpu_custom_call.1} parent=5 // pred_region
        // Predicated region
        $region29: #{tpu_custom_call.1} parent=27 // pred_check
          %p201 = pneg %p48
        $region30: #{tpu_custom_call.1} parent=27 // pred_check_branch
          %203 = sbr.rel (%p201) target = $region32
        $region31: #{tpu_custom_call.1} parent=27 // pred_region
          %s204 = smul.u32 16, %s21
          %p205 = scmp.lt.s32.totalorder %s22, 1
          %s206 = scalar_select %p205, %s22, 1
          %p207 = scmp.lt.s32.totalorder %s204, 15
          %s208 = scalar_select %p207, %s204, 15
          %s209 = smul.addr %s206, 128
          %s210 = sadd.s32 %s208, %s209
          %s211 = smul.addr %s210, 8
          %s212 = scalar_lea.vmem %s0, %s211
          %s213 = smul.u32 16, %s21
        $region32: #{tpu_custom_call.1} parent=27 // pred_fallthru
          _
        // Predicated region
        $region33: #{tpu_custom_call.1} parent=27 // pred_check
          %p214 = pneg %p76
        $region34: #{tpu_custom_call.1} parent=27 // pred_check_branch
          %216 = sbr.rel (%p214) target = $region36
        $region35: #{tpu_custom_call.1} parent=27 // pred_region
          %s217 = smul.u32 16, %s21
          %p218 = scmp.lt.s32.totalorder %s22, 1
          %s219 = scalar_select %p218, %s22, 1
          %p220 = scmp.lt.s32.totalorder %s217, 15
          %s221 = scalar_select %p220, %s217, 15
          %s222 = smul.addr %s219, 128
          %s223 = sadd.s32 %s221, %s222
          %s224 = smul.addr %s223, 8
          %s225 = scalar_lea.vmem %s1, %s224
          %s226 = smul.u32 16, %s21
        $region36: #{tpu_custom_call.1} parent=27 // pred_fallthru
          _
      $region28: #{tpu_custom_call.1} parent=5 // pred_fallthru
        _
      %p227 = scmp.le.s32.totalorder 1, %s14
      %p228 = scmp.lt.s32.totalorder %s14, 3
      %p229 = pnand %p227, %p228
      %p230 = pneg %p229
      // Predicated region
      $region37: #{tpu_custom_call.1} parent=5 // pred_check
        _
      $region38: #{tpu_custom_call.1} parent=5 // pred_check_branch
        %232 = sbr.rel (%p229) target = $region40
      $region39: #{tpu_custom_call.1} parent=5 // pred_region
        %s233 = ssub.s32 %s14, 1
        %s234 = smul.u32 16, %s23
        %p235 = scmp.lt.s32.totalorder %s24, 1
        %s236 = scalar_select %p235, %s24, 1
        %p237 = scmp.lt.s32.totalorder %s234, 15
        %s238 = scalar_select %p237, %s234, 15
        %s239 = smul.addr %s236, 128
        %s240 = sadd.s32 %s238, %s239
        %s241 = smul.addr %s240, 8
        %s242 = scalar_lea.vmem %s0, %s241
        %p243 = pneg %p54
        %p244 = pneg %p51
        %s245 = smul.u32 16, %s23
        %p246 = scmp.lt.s32.totalorder %s24, 1
        %s247 = scalar_select %p246, %s24, 1
        %p248 = scmp.lt.s32.totalorder %s245, 15
        %s249 = scalar_select %p248, %s245, 15
        %s250 = smul.addr %s247, 128
        %s251 = sadd.s32 %s249, %s250
        %s252 = smul.addr %s251, 8
        %s253 = scalar_lea.vmem %s1, %s252
        %p254 = pneg %p82
        %p255 = pneg %p79
        %p256 = pneg %p103
        %p257 = pneg %p100
        %p258 = pneg %p124
        %p259 = pneg %p121
        %p260 = pneg %p145
        %p261 = pneg %p142
        %p262 = pneg %p173
        %p263 = pneg %p170
        %s264 = sand.u32 %s160, 1
        %s265 = scalar_lea.sflag [#allocation3], %s264
        %s266 = sand.u32 %s160, 1
        %s267 = smul.addr %s266, 8
        %s268 = scalar_lea.vmem [#allocation2], %s267
        %s269 = smul.u32 16, %s23
        %p270 = scmp.lt.s32.totalorder %s24, 1
        %s271 = scalar_select %p270, %s24, 1
        %p272 = scmp.lt.s32.totalorder %s269, 15
        %s273 = scalar_select %p272, %s269, 15
        %s274 = smul.addr %s271, 128
        %s275 = sadd.s32 %s273, %s274
        %s276 = smul.addr %s275, 8
        %s277 = scalar_lea.vmem %s0, %s276
        %s278 = smul.u32 16, %s23
        %s279 = smul.u32 16, %s23
        %p280 = scmp.lt.s32.totalorder %s24, 1
        %s281 = scalar_select %p280, %s24, 1
        %p282 = scmp.lt.s32.totalorder %s279, 15
        %s283 = scalar_select %p282, %s279, 15
        %s284 = smul.addr %s281, 128
        %s285 = sadd.s32 %s283, %s284
        %s286 = smul.addr %s285, 8
        %s287 = scalar_lea.vmem %s1, %s286
        %s288 = smul.u32 16, %s23
        %v289 = vld [vmem:[%s287] sm:$0xff]
        %v290 = vld [vmem:[%s287 + $0x8] sm:$0xff]
        %v291 = vld [vmem:[%s287 + $0x10] sm:$0xff]
        %v292 = vld [vmem:[%s287 + $0x18] sm:$0xff]
        %v293 = vld [vmem:[%s287 + $0x20] sm:$0xff]
        %v294 = vld [vmem:[%s287 + $0x28] sm:$0xff]
        %v295 = vld [vmem:[%s287 + $0x30] sm:$0xff]
        %v296 = vld [vmem:[%s287 + $0x38] sm:$0xff]
        %v297 = vld [vmem:[%s287 + $0x40] sm:$0xff]
        %v298 = vld [vmem:[%s287 + $0x48] sm:$0xff]
        %v299 = vld [vmem:[%s287 + $0x50] sm:$0xff]
        %v300 = vld [vmem:[%s287 + $0x58] sm:$0xff]
        %v301 = vld [vmem:[%s287 + $0x60] sm:$0xff]
        %v302 = vld [vmem:[%s287 + $0x68] sm:$0xff]
        %v303 = vld [vmem:[%s287 + $0x70] sm:$0xff]
        %v304 = vld [vmem:[%s287 + $0x78] sm:$0xff]
        %v305 = vld [vmem:[%s287 + $0x80] sm:$0xff]
        %v306 = vld [vmem:[%s287 + $0x88] sm:$0xff]
        %v307 = vld [vmem:[%s287 + $0x90] sm:$0xff]
        %v308 = vld [vmem:[%s287 + $0x98] sm:$0xff]
        %v309 = vld [vmem:[%s287 + $0xa0] sm:$0xff]
        %v310 = vld [vmem:[%s287 + $0xa8] sm:$0xff]
        %v311 = vld [vmem:[%s287 + $0xb0] sm:$0xff]
        %v312 = vld [vmem:[%s287 + $0xb8] sm:$0xff]
        %v313 = vld [vmem:[%s287 + $0xc0] sm:$0xff]
        %v314 = vld [vmem:[%s287 + $0xc8] sm:$0xff]
        %v315 = vld [vmem:[%s287 + $0xd0] sm:$0xff]
        %v316 = vld [vmem:[%s287 + $0xd8] sm:$0xff]
        %v317 = vld [vmem:[%s287 + $0xe0] sm:$0xff]
        %v318 = vld [vmem:[%s287 + $0xe8] sm:$0xff]
        %v319 = vld [vmem:[%s287 + $0xf0] sm:$0xff]
        %v320 = vld [vmem:[%s287 + $0xf8] sm:$0xff]
        %v321 = vld [vmem:[%s287 + $0x100] sm:$0xff]
        %v322 = vld [vmem:[%s287 + $0x108] sm:$0xff]
        %v323 = vld [vmem:[%s287 + $0x110] sm:$0xff]
        %v324 = vld [vmem:[%s287 + $0x118] sm:$0xff]
        %v325 = vld [vmem:[%s287 + $0x120] sm:$0xff]
        %v326 = vld [vmem:[%s287 + $0x128] sm:$0xff]
        %v327 = vld [vmem:[%s287 + $0x130] sm:$0xff]
        %v328 = vld [vmem:[%s287 + $0x138] sm:$0xff]
        %v329 = vld [vmem:[%s287 + $0x140] sm:$0xff]
        %v330 = vld [vmem:[%s287 + $0x148] sm:$0xff]
        %v331 = vld [vmem:[%s287 + $0x150] sm:$0xff]
        %v332 = vld [vmem:[%s287 + $0x158] sm:$0xff]
        %v333 = vld [vmem:[%s287 + $0x160] sm:$0xff]
        %v334 = vld [vmem:[%s287 + $0x168] sm:$0xff]
        %v335 = vld [vmem:[%s287 + $0x170] sm:$0xff]
        %v336 = vld [vmem:[%s287 + $0x178] sm:$0xff]
        %v337 = vld [vmem:[%s287 + $0x180] sm:$0xff]
        %v338 = vld [vmem:[%s287 + $0x188] sm:$0xff]
        %v339 = vld [vmem:[%s287 + $0x190] sm:$0xff]
        %v340 = vld [vmem:[%s287 + $0x198] sm:$0xff]
        %v341 = vld [vmem:[%s287 + $0x1a0] sm:$0xff]
        %v342 = vld [vmem:[%s287 + $0x1a8] sm:$0xff]
        %v343 = vld [vmem:[%s287 + $0x1b0] sm:$0xff]
        %v344 = vld [vmem:[%s287 + $0x1b8] sm:$0xff]
        %v345 = vld [vmem:[%s287 + $0x1c0] sm:$0xff]
        %v346 = vld [vmem:[%s287 + $0x1c8] sm:$0xff]
        %v347 = vld [vmem:[%s287 + $0x1d0] sm:$0xff]
        %v348 = vld [vmem:[%s287 + $0x1d8] sm:$0xff]
        %v349 = vld [vmem:[%s287 + $0x1e0] sm:$0xff]
        %v350 = vld [vmem:[%s287 + $0x1e8] sm:$0xff]
        %v351 = vld [vmem:[%s287 + $0x1f0] sm:$0xff]
        %v352 = vld [vmem:[%s287 + $0x1f8] sm:$0xff]
        %v353 = vld [vmem:[%s287 + $0x200] sm:$0xff]
        %v354 = vld [vmem:[%s287 + $0x208] sm:$0xff]
        %v355 = vld [vmem:[%s287 + $0x210] sm:$0xff]
        %v356 = vld [vmem:[%s287 + $0x218] sm:$0xff]
        %v357 = vld [vmem:[%s287 + $0x220] sm:$0xff]
        %v358 = vld [vmem:[%s287 + $0x228] sm:$0xff]
        %v359 = vld [vmem:[%s287 + $0x230] sm:$0xff]
        %v360 = vld [vmem:[%s287 + $0x238] sm:$0xff]
        %v361 = vld [vmem:[%s287 + $0x240] sm:$0xff]
        %v362 = vld [vmem:[%s287 + $0x248] sm:$0xff]
        %v363 = vld [vmem:[%s287 + $0x250] sm:$0xff]
        %v364 = vld [vmem:[%s287 + $0x258] sm:$0xff]
        %v365 = vld [vmem:[%s287 + $0x260] sm:$0xff]
        %v366 = vld [vmem:[%s287 + $0x268] sm:$0xff]
        %v367 = vld [vmem:[%s287 + $0x270] sm:$0xff]
        %v368 = vld [vmem:[%s287 + $0x278] sm:$0xff]
        %v369 = vld [vmem:[%s287 + $0x280] sm:$0xff]
        %v370 = vld [vmem:[%s287 + $0x288] sm:$0xff]
        %v371 = vld [vmem:[%s287 + $0x290] sm:$0xff]
        %v372 = vld [vmem:[%s287 + $0x298] sm:$0xff]
        %v373 = vld [vmem:[%s287 + $0x2a0] sm:$0xff]
        %v374 = vld [vmem:[%s287 + $0x2a8] sm:$0xff]
        %v375 = vld [vmem:[%s287 + $0x2b0] sm:$0xff]
        %v376 = vld [vmem:[%s287 + $0x2b8] sm:$0xff]
        %v377 = vld [vmem:[%s287 + $0x2c0] sm:$0xff]
        %v378 = vld [vmem:[%s287 + $0x2c8] sm:$0xff]
        %v379 = vld [vmem:[%s287 + $0x2d0] sm:$0xff]
        %v380 = vld [vmem:[%s287 + $0x2d8] sm:$0xff]
        %v381 = vld [vmem:[%s287 + $0x2e0] sm:$0xff]
        %v382 = vld [vmem:[%s287 + $0x2e8] sm:$0xff]
        %v383 = vld [vmem:[%s287 + $0x2f0] sm:$0xff]
        %v384 = vld [vmem:[%s287 + $0x2f8] sm:$0xff]
        %v385 = vld [vmem:[%s287 + $0x300] sm:$0xff]
        %v386 = vld [vmem:[%s287 + $0x308] sm:$0xff]
        %v387 = vld [vmem:[%s287 + $0x310] sm:$0xff]
        %v388 = vld [vmem:[%s287 + $0x318] sm:$0xff]
        %v389 = vld [vmem:[%s287 + $0x320] sm:$0xff]
        %v390 = vld [vmem:[%s287 + $0x328] sm:$0xff]
        %v391 = vld [vmem:[%s287 + $0x330] sm:$0xff]
        %v392 = vld [vmem:[%s287 + $0x338] sm:$0xff]
        %v393 = vld [vmem:[%s287 + $0x340] sm:$0xff]
        %v394 = vld [vmem:[%s287 + $0x348] sm:$0xff]
        %v395 = vld [vmem:[%s287 + $0x350] sm:$0xff]
        %v396 = vld [vmem:[%s287 + $0x358] sm:$0xff]
        %v397 = vld [vmem:[%s287 + $0x360] sm:$0xff]
        %v398 = vld [vmem:[%s287 + $0x368] sm:$0xff]
        %v399 = vld [vmem:[%s287 + $0x370] sm:$0xff]
        %v400 = vld [vmem:[%s287 + $0x378] sm:$0xff]
        %v401 = vld [vmem:[%s287 + $0x380] sm:$0xff]
        %v402 = vld [vmem:[%s287 + $0x388] sm:$0xff]
        %v403 = vld [vmem:[%s287 + $0x390] sm:$0xff]
        %v404 = vld [vmem:[%s287 + $0x398] sm:$0xff]
        %v405 = vld [vmem:[%s287 + $0x3a0] sm:$0xff]
        %v406 = vld [vmem:[%s287 + $0x3a8] sm:$0xff]
        %v407 = vld [vmem:[%s287 + $0x3b0] sm:$0xff]
        %v408 = vld [vmem:[%s287 + $0x3b8] sm:$0xff]
        %v409 = vld [vmem:[%s287 + $0x3c0] sm:$0xff]
        %v410 = vld [vmem:[%s287 + $0x3c8] sm:$0xff]
        %v411 = vld [vmem:[%s287 + $0x3d0] sm:$0xff]
        %v412 = vld [vmem:[%s287 + $0x3d8] sm:$0xff]
        %v413 = vld [vmem:[%s287 + $0x3e0] sm:$0xff]
        %v414 = vld [vmem:[%s287 + $0x3e8] sm:$0xff]
        %v415 = vld [vmem:[%s287 + $0x3f0] sm:$0xff]
        %v416 = vld [vmem:[%s287 + $0x3f8] sm:$0xff]
        %v417 = vld [vmem:[%s3] sm:$0xf]
        %vm418 = vcmask 31744
        %v420 = vsel %vm418, %v289, 0
        %v423 = vsel %vm418, %v290, 0
        %v426 = vsel %vm418, %v291, 0
        %v429 = vsel %vm418, %v292, 0
        %v432 = vsel %vm418, %v293, 0
        %v435 = vsel %vm418, %v294, 0
        %v438 = vsel %vm418, %v295, 0
        %v441 = vsel %vm418, %v296, 0
        %v444 = vsel %vm418, %v297, 0
        %v447 = vsel %vm418, %v298, 0
        %v450 = vsel %vm418, %v299, 0
        %v453 = vsel %vm418, %v300, 0
        %v456 = vsel %vm418, %v301, 0
        %v459 = vsel %vm418, %v302, 0
        %v462 = vsel %vm418, %v303, 0
        %v465 = vsel %vm418, %v304, 0
        %v468 = vsel %vm418, %v305, 0
        %v471 = vsel %vm418, %v306, 0
        %v474 = vsel %vm418, %v307, 0
        %v477 = vsel %vm418, %v308, 0
        %v480 = vsel %vm418, %v309, 0
        %v483 = vsel %vm418, %v310, 0
        %v486 = vsel %vm418, %v311, 0
        %v489 = vsel %vm418, %v312, 0
        %v492 = vsel %vm418, %v313, 0
        %v495 = vsel %vm418, %v314, 0
        %v498 = vsel %vm418, %v315, 0
        %v501 = vsel %vm418, %v316, 0
        %v504 = vsel %vm418, %v317, 0
        %v507 = vsel %vm418, %v318, 0
        %v510 = vsel %vm418, %v319, 0
        %v513 = vsel %vm418, %v320, 0
        %v516 = vsel %vm418, %v321, 0
        %v519 = vsel %vm418, %v322, 0
        %v522 = vsel %vm418, %v323, 0
        %v525 = vsel %vm418, %v324, 0
        %v528 = vsel %vm418, %v325, 0
        %v531 = vsel %vm418, %v326, 0
        %v534 = vsel %vm418, %v327, 0
        %v537 = vsel %vm418, %v328, 0
        %v540 = vsel %vm418, %v329, 0
        %v543 = vsel %vm418, %v330, 0
        %v546 = vsel %vm418, %v331, 0
        %v549 = vsel %vm418, %v332, 0
        %v552 = vsel %vm418, %v333, 0
        %v555 = vsel %vm418, %v334, 0
        %v558 = vsel %vm418, %v335, 0
        %v561 = vsel %vm418, %v336, 0
        %v564 = vsel %vm418, %v337, 0
        %v567 = vsel %vm418, %v338, 0
        %v570 = vsel %vm418, %v339, 0
        %v573 = vsel %vm418, %v340, 0
        %v576 = vsel %vm418, %v341, 0
        %v579 = vsel %vm418, %v342, 0
        %v582 = vsel %vm418, %v343, 0
        %v585 = vsel %vm418, %v344, 0
        %v588 = vsel %vm418, %v345, 0
        %v591 = vsel %vm418, %v346, 0
        %v594 = vsel %vm418, %v347, 0
        %v597 = vsel %vm418, %v348, 0
        %v600 = vsel %vm418, %v349, 0
        %v603 = vsel %vm418, %v350, 0
        %v606 = vsel %vm418, %v351, 0
        %v609 = vsel %vm418, %v352, 0
        %v612 = vsel %vm418, %v353, 0
        %v615 = vsel %vm418, %v354, 0
        %v618 = vsel %vm418, %v355, 0
        %v621 = vsel %vm418, %v356, 0
        %v624 = vsel %vm418, %v357, 0
        %v627 = vsel %vm418, %v358, 0
        %v630 = vsel %vm418, %v359, 0
        %v633 = vsel %vm418, %v360, 0
        %v636 = vsel %vm418, %v361, 0
        %v639 = vsel %vm418, %v362, 0
        %v642 = vsel %vm418, %v363, 0
        %v645 = vsel %vm418, %v364, 0
        %v648 = vsel %vm418, %v365, 0
        %v651 = vsel %vm418, %v366, 0
        %v654 = vsel %vm418, %v367, 0
        %v657 = vsel %vm418, %v368, 0
        %v660 = vsel %vm418, %v369, 0
        %v663 = vsel %vm418, %v370, 0
        %v666 = vsel %vm418, %v371, 0
        %v669 = vsel %vm418, %v372, 0
        %v672 = vsel %vm418, %v373, 0
        %v675 = vsel %vm418, %v374, 0
        %v678 = vsel %vm418, %v375, 0
        %v681 = vsel %vm418, %v376, 0
        %v684 = vsel %vm418, %v377, 0
        %v687 = vsel %vm418, %v378, 0
        %v690 = vsel %vm418, %v379, 0
        %v693 = vsel %vm418, %v380, 0
        %v696 = vsel %vm418, %v381, 0
        %v699 = vsel %vm418, %v382, 0
        %v702 = vsel %vm418, %v383, 0
        %v705 = vsel %vm418, %v384, 0
        %v708 = vsel %vm418, %v385, 0
        %v711 = vsel %vm418, %v386, 0
        %v714 = vsel %vm418, %v387, 0
        %v717 = vsel %vm418, %v388, 0
        %v720 = vsel %vm418, %v389, 0
        %v723 = vsel %vm418, %v390, 0
        %v726 = vsel %vm418, %v391, 0
        %v729 = vsel %vm418, %v392, 0
        %v732 = vsel %vm418, %v393, 0
        %v735 = vsel %vm418, %v394, 0
        %v738 = vsel %vm418, %v395, 0
        %v741 = vsel %vm418, %v396, 0
        %v744 = vsel %vm418, %v397, 0
        %v747 = vsel %vm418, %v398, 0
        %v750 = vsel %vm418, %v399, 0
        %v753 = vsel %vm418, %v400, 0
        %v756 = vsel %vm418, %v401, 0
        %v759 = vsel %vm418, %v402, 0
        %v762 = vsel %vm418, %v403, 0
        %v765 = vsel %vm418, %v404, 0
        %v768 = vsel %vm418, %v405, 0
        %v771 = vsel %vm418, %v406, 0
        %v774 = vsel %vm418, %v407, 0
        %v777 = vsel %vm418, %v408, 0
        %v780 = vsel %vm418, %v409, 0
        %v783 = vsel %vm418, %v410, 0
        %v786 = vsel %vm418, %v411, 0
        %v789 = vsel %vm418, %v412, 0
        %v792 = vsel %vm418, %v413, 0
        %v795 = vsel %vm418, %v414, 0
        %v798 = vsel %vm418, %v415, 0
        %v801 = vsel %vm418, %v416, 0
        %vm803 = vcmask 1043456
        %v805 = vsel %vm803, %v417, 0
        %807 = vmatprep.subr.mxu0 0.0
        %808 = vmatpush1.msra.mxu0 0.0
        %809 = vmatprep.subr.mxu0 0.0
        %810 = vmatpush1.msra.mxu0 0.0
        %811 = vmatprep.subr.mxu0 0.0
        %812 = vmatpush1.msra.mxu0 0.0
        %813 = vmatprep.subr.mxu0 0.0
        %814 = vmatpush1.msra.mxu0 0.0
        %815 = vmatprep.subr.mxu0 0.0
        %816 = vmatpush1.msra.mxu0 0.0
        %817 = vmatprep.subr.mxu0 0.0
        %818 = vmatpush1.msra.mxu0 0.0
        %819 = vmatprep.subr.mxu0 0.0
        %820 = vmatpush1.msra.mxu0 0.0
        %821 = vmatprep.subr.mxu0 0.0
        %822 = vmatpush1.msra.mxu0 0.0
        %823 = vmatprep.subr.mxu0 0.0
        %824 = vmatpush1.msra.mxu0 0.0
        %825 = vmatprep.subr.mxu0 0.0
        %826 = vmatpush1.msra.mxu0 0.0
        %827 = vmatprep.subr.mxu0 0.0
        %828 = vmatpush1.msra.mxu0 0.0
        %829 = vmatprep.subr.mxu0 0.0
        %830 = vmatpush1.msra.mxu0 0.0
        %831 = vmatprep.subr.mxu0 0.0
        %832 = vmatpush1.msra.mxu0 0.0
        %833 = vmatprep.subr.mxu0 0.0
        %834 = vmatpush1.msra.mxu0 0.0
        %835 = vmatprep.subr.mxu0 0.0
        %836 = vmatpush1.msra.mxu0 0.0
        %837 = vmatprep.subr.mxu0 0.0
        %838 = vmatpush1.msra.mxu0 %v805
        %839 = vmatprep.subr.mxu0 0.0
        %840 = vmatpush2.msra.mxu0 0.0
        %841 = vmatprep.subr.mxu0 0.0
        %842 = vmatpush2.msra.mxu0 0.0
        %843 = vmatprep.subr.mxu0 0.0
        %844 = vmatpush2.msra.mxu0 0.0
        %845 = vmatprep.subr.mxu0 0.0
        %846 = vmatpush2.msra.mxu0 0.0
        %847 = vmatprep.subr.mxu0 0.0
        %848 = vmatpush2.msra.mxu0 0.0
        %849 = vmatprep.subr.mxu0 0.0
        %850 = vmatpush2.msra.mxu0 0.0
        %851 = vmatprep.subr.mxu0 0.0
        %852 = vmatpush2.msra.mxu0 0.0
        %853 = vmatprep.subr.mxu0 0.0
        %854 = vmatpush2.msra.mxu0 0.0
        %855 = vmatprep.subr.mxu0 0.0
        %856 = vmatpush2.msra.mxu0 0.0
        %857 = vmatprep.subr.mxu0 0.0
        %858 = vmatpush2.msra.mxu0 0.0
        %859 = vmatprep.subr.mxu0 0.0
        %860 = vmatpush2.msra.mxu0 0.0
        %861 = vmatprep.subr.mxu0 0.0
        %862 = vmatpush2.msra.mxu0 0.0
        %863 = vmatprep.subr.mxu0 0.0
        %864 = vmatpush2.msra.mxu0 0.0
        %865 = vmatprep.subr.mxu0 0.0
        %866 = vmatpush2.msra.mxu0 0.0
        %867 = vmatprep.subr.mxu0 0.0
        %868 = vmatpush2.msra.mxu0 0.0
        %869 = vmatprep.subr.mxu0 0.0
        %870 = vmatpush2.msra.mxu0 0.0
        %871 = vmatprep.mubr.f32.mxu0 0.0
        %872 = vmatmul.mubr.f32.gmra.mxu0 %v420
        %v873 = vpop.f32.mrf.mxu0
        %v874 = vadd.f32 0.0, %v873
        %v875 = vpop.f32.mrf.mxu0
        %876 = vmatprep.mubr.f32.mxu0 0.0
        %877 = vmatmul.mubr.f32.gmra.mxu0 %v423
        %v878 = vpop.f32.mrf.mxu0
        %v879 = vadd.f32 0.0, %v878
        %v880 = vpop.f32.mrf.mxu0
        %881 = vmatprep.mubr.f32.mxu0 0.0
        %882 = vmatmul.mubr.f32.gmra.mxu0 %v426
        %v883 = vpop.f32.mrf.mxu0
        %v884 = vadd.f32 0.0, %v883
        %v885 = vpop.f32.mrf.mxu0
        %886 = vmatprep.mubr.f32.mxu0 0.0
        %887 = vmatmul.mubr.f32.gmra.mxu0 %v429
        %v888 = vpop.f32.mrf.mxu0
        %v889 = vadd.f32 0.0, %v888
        %v890 = vpop.f32.mrf.mxu0
        %891 = vmatprep.mubr.f32.mxu0 0.0
        %892 = vmatmul.mubr.f32.gmra.mxu0 %v432
        %v893 = vpop.f32.mrf.mxu0
        %v894 = vadd.f32 0.0, %v893
        %v895 = vpop.f32.mrf.mxu0
        %896 = vmatprep.mubr.f32.mxu0 0.0
        %897 = vmatmul.mubr.f32.gmra.mxu0 %v435
        %v898 = vpop.f32.mrf.mxu0
        %v899 = vadd.f32 0.0, %v898
        %v900 = vpop.f32.mrf.mxu0
        %901 = vmatprep.mubr.f32.mxu0 0.0
        %902 = vmatmul.mubr.f32.gmra.mxu0 %v438
        %v903 = vpop.f32.mrf.mxu0
        %v904 = vadd.f32 0.0, %v903
        %v905 = vpop.f32.mrf.mxu0
        %906 = vmatprep.mubr.f32.mxu0 0.0
        %907 = vmatmul.mubr.f32.gmra.mxu0 %v441
        %v908 = vpop.f32.mrf.mxu0
        %v909 = vadd.f32 0.0, %v908
        %v910 = vpop.f32.mrf.mxu0
        %911 = vmatprep.mubr.f32.mxu0 0.0
        %912 = vmatmul.mubr.f32.gmra.mxu0 %v444
        %v913 = vpop.f32.mrf.mxu0
        %v914 = vadd.f32 0.0, %v913
        %v915 = vpop.f32.mrf.mxu0
        %916 = vmatprep.mubr.f32.mxu0 0.0
        %917 = vmatmul.mubr.f32.gmra.mxu0 %v447
        %v918 = vpop.f32.mrf.mxu0
        %v919 = vadd.f32 0.0, %v918
        %v920 = vpop.f32.mrf.mxu0
        %921 = vmatprep.mubr.f32.mxu0 0.0
        %922 = vmatmul.mubr.f32.gmra.mxu0 %v450
        %v923 = vpop.f32.mrf.mxu0
        %v924 = vadd.f32 0.0, %v923
        %v925 = vpop.f32.mrf.mxu0
        %926 = vmatprep.mubr.f32.mxu0 0.0
        %927 = vmatmul.mubr.f32.gmra.mxu0 %v453
        %v928 = vpop.f32.mrf.mxu0
        %v929 = vadd.f32 0.0, %v928
        %v930 = vpop.f32.mrf.mxu0
        %931 = vmatprep.mubr.f32.mxu0 0.0
        %932 = vmatmul.mubr.f32.gmra.mxu0 %v456
        %v933 = vpop.f32.mrf.mxu0
        %v934 = vadd.f32 0.0, %v933
        %v935 = vpop.f32.mrf.mxu0
        %936 = vmatprep.mubr.f32.mxu0 0.0
        %937 = vmatmul.mubr.f32.gmra.mxu0 %v459
        %v938 = vpop.f32.mrf.mxu0
        %v939 = vadd.f32 0.0, %v938
        %v940 = vpop.f32.mrf.mxu0
        %941 = vmatprep.mubr.f32.mxu0 0.0
        %942 = vmatmul.mubr.f32.gmra.mxu0 %v462
        %v943 = vpop.f32.mrf.mxu0
        %v944 = vadd.f32 0.0, %v943
        %v945 = vpop.f32.mrf.mxu0
        %946 = vmatprep.mubr.f32.mxu0 0.0
        %947 = vmatmul.mubr.f32.gmra.mxu0 %v465
        %v948 = vpop.f32.mrf.mxu0
        %v949 = vadd.f32 0.0, %v948
        %v950 = vpop.f32.mrf.mxu0
        %951 = vmatprep.mubr.f32.mxu0 0.0
        %952 = vmatmul.mubr.f32.gmra.mxu0 %v468
        %v953 = vpop.f32.mrf.mxu0
        %v954 = vadd.f32 0.0, %v953
        %v955 = vpop.f32.mrf.mxu0
        %956 = vmatprep.mubr.f32.mxu0 0.0
        %957 = vmatmul.mubr.f32.gmra.mxu0 %v471
        %v958 = vpop.f32.mrf.mxu0
        %v959 = vadd.f32 0.0, %v958
        %v960 = vpop.f32.mrf.mxu0
        %961 = vmatprep.mubr.f32.mxu0 0.0
        %962 = vmatmul.mubr.f32.gmra.mxu0 %v474
        %v963 = vpop.f32.mrf.mxu0
        %v964 = vadd.f32 0.0, %v963
        %v965 = vpop.f32.mrf.mxu0
        %966 = vmatprep.mubr.f32.mxu0 0.0
        %967 = vmatmul.mubr.f32.gmra.mxu0 %v477
        %v968 = vpop.f32.mrf.mxu0
        %v969 = vadd.f32 0.0, %v968
        %v970 = vpop.f32.mrf.mxu0
        %971 = vmatprep.mubr.f32.mxu0 0.0
        %972 = vmatmul.mubr.f32.gmra.mxu0 %v480
        %v973 = vpop.f32.mrf.mxu0
        %v974 = vadd.f32 0.0, %v973
        %v975 = vpop.f32.mrf.mxu0
        %976 = vmatprep.mubr.f32.mxu0 0.0
        %977 = vmatmul.mubr.f32.gmra.mxu0 %v483
        %v978 = vpop.f32.mrf.mxu0
        %v979 = vadd.f32 0.0, %v978
        %v980 = vpop.f32.mrf.mxu0
        %981 = vmatprep.mubr.f32.mxu0 0.0
        %982 = vmatmul.mubr.f32.gmra.mxu0 %v486
        %v983 = vpop.f32.mrf.mxu0
        %v984 = vadd.f32 0.0, %v983
        %v985 = vpop.f32.mrf.mxu0
        %986 = vmatprep.mubr.f32.mxu0 0.0
        %987 = vmatmul.mubr.f32.gmra.mxu0 %v489
        %v988 = vpop.f32.mrf.mxu0
        %v989 = vadd.f32 0.0, %v988
        %v990 = vpop.f32.mrf.mxu0
        %991 = vmatprep.mubr.f32.mxu0 0.0
        %992 = vmatmul.mubr.f32.gmra.mxu0 %v492
        %v993 = vpop.f32.mrf.mxu0
        %v994 = vadd.f32 0.0, %v993
        %v995 = vpop.f32.mrf.mxu0
        %996 = vmatprep.mubr.f32.mxu0 0.0
        %997 = vmatmul.mubr.f32.gmra.mxu0 %v495
        %v998 = vpop.f32.mrf.mxu0
        %v999 = vadd.f32 0.0, %v998
        %v1000 = vpop.f32.mrf.mxu0
        %1001 = vmatprep.mubr.f32.mxu0 0.0
        %1002 = vmatmul.mubr.f32.gmra.mxu0 %v498
        %v1003 = vpop.f32.mrf.mxu0
        %v1004 = vadd.f32 0.0, %v1003
        %v1005 = vpop.f32.mrf.mxu0
        %1006 = vmatprep.mubr.f32.mxu0 0.0
        %1007 = vmatmul.mubr.f32.gmra.mxu0 %v501
        %v1008 = vpop.f32.mrf.mxu0
        %v1009 = vadd.f32 0.0, %v1008
        %v1010 = vpop.f32.mrf.mxu0
        %1011 = vmatprep.mubr.f32.mxu0 0.0
        %1012 = vmatmul.mubr.f32.gmra.mxu0 %v504
        %v1013 = vpop.f32.mrf.mxu0
        %v1014 = vadd.f32 0.0, %v1013
        %v1015 = vpop.f32.mrf.mxu0
        %1016 = vmatprep.mubr.f32.mxu0 0.0
        %1017 = vmatmul.mubr.f32.gmra.mxu0 %v507
        %v1018 = vpop.f32.mrf.mxu0
        %v1019 = vadd.f32 0.0, %v1018
        %v1020 = vpop.f32.mrf.mxu0
        %1021 = vmatprep.mubr.f32.mxu0 0.0
        %1022 = vmatmul.mubr.f32.gmra.mxu0 %v510
        %v1023 = vpop.f32.mrf.mxu0
        %v1024 = vadd.f32 0.0, %v1023
        %v1025 = vpop.f32.mrf.mxu0
        %1026 = vmatprep.mubr.f32.mxu0 0.0
        %1027 = vmatmul.mubr.f32.gmra.mxu0 %v513
        %v1028 = vpop.f32.mrf.mxu0
        %v1029 = vadd.f32 0.0, %v1028
        %v1030 = vpop.f32.mrf.mxu0
        %1031 = vmatprep.mubr.f32.mxu0 0.0
        %1032 = vmatmul.mubr.f32.gmra.mxu0 %v516
        %v1033 = vpop.f32.mrf.mxu0
        %v1034 = vadd.f32 0.0, %v1033
        %v1035 = vpop.f32.mrf.mxu0
        %1036 = vmatprep.mubr.f32.mxu0 0.0
        %1037 = vmatmul.mubr.f32.gmra.mxu0 %v519
        %v1038 = vpop.f32.mrf.mxu0
        %v1039 = vadd.f32 0.0, %v1038
        %v1040 = vpop.f32.mrf.mxu0
        %1041 = vmatprep.mubr.f32.mxu0 0.0
        %1042 = vmatmul.mubr.f32.gmra.mxu0 %v522
        %v1043 = vpop.f32.mrf.mxu0
        %v1044 = vadd.f32 0.0, %v1043
        %v1045 = vpop.f32.mrf.mxu0
        %1046 = vmatprep.mubr.f32.mxu0 0.0
        %1047 = vmatmul.mubr.f32.gmra.mxu0 %v525
        %v1048 = vpop.f32.mrf.mxu0
        %v1049 = vadd.f32 0.0, %v1048
        %v1050 = vpop.f32.mrf.mxu0
        %1051 = vmatprep.mubr.f32.mxu0 0.0
        %1052 = vmatmul.mubr.f32.gmra.mxu0 %v528
        %v1053 = vpop.f32.mrf.mxu0
        %v1054 = vadd.f32 0.0, %v1053
        %v1055 = vpop.f32.mrf.mxu0
        %1056 = vmatprep.mubr.f32.mxu0 0.0
        %1057 = vmatmul.mubr.f32.gmra.mxu0 %v531
        %v1058 = vpop.f32.mrf.mxu0
        %v1059 = vadd.f32 0.0, %v1058
        %v1060 = vpop.f32.mrf.mxu0
        %1061 = vmatprep.mubr.f32.mxu0 0.0
        %1062 = vmatmul.mubr.f32.gmra.mxu0 %v534
        %v1063 = vpop.f32.mrf.mxu0
        %v1064 = vadd.f32 0.0, %v1063
        %v1065 = vpop.f32.mrf.mxu0
        %1066 = vmatprep.mubr.f32.mxu0 0.0
        %1067 = vmatmul.mubr.f32.gmra.mxu0 %v537
        %v1068 = vpop.f32.mrf.mxu0
        %v1069 = vadd.f32 0.0, %v1068
        %v1070 = vpop.f32.mrf.mxu0
        %1071 = vmatprep.mubr.f32.mxu0 0.0
        %1072 = vmatmul.mubr.f32.gmra.mxu0 %v540
        %v1073 = vpop.f32.mrf.mxu0
        %v1074 = vadd.f32 0.0, %v1073
        %v1075 = vpop.f32.mrf.mxu0
        %1076 = vmatprep.mubr.f32.mxu0 0.0
        %1077 = vmatmul.mubr.f32.gmra.mxu0 %v543
        %v1078 = vpop.f32.mrf.mxu0
        %v1079 = vadd.f32 0.0, %v1078
        %v1080 = vpop.f32.mrf.mxu0
        %1081 = vmatprep.mubr.f32.mxu0 0.0
        %1082 = vmatmul.mubr.f32.gmra.mxu0 %v546
        %v1083 = vpop.f32.mrf.mxu0
        %v1084 = vadd.f32 0.0, %v1083
        %v1085 = vpop.f32.mrf.mxu0
        %1086 = vmatprep.mubr.f32.mxu0 0.0
        %1087 = vmatmul.mubr.f32.gmra.mxu0 %v549
        %v1088 = vpop.f32.mrf.mxu0
        %v1089 = vadd.f32 0.0, %v1088
        %v1090 = vpop.f32.mrf.mxu0
        %1091 = vmatprep.mubr.f32.mxu0 0.0
        %1092 = vmatmul.mubr.f32.gmra.mxu0 %v552
        %v1093 = vpop.f32.mrf.mxu0
        %v1094 = vadd.f32 0.0, %v1093
        %v1095 = vpop.f32.mrf.mxu0
        %1096 = vmatprep.mubr.f32.mxu0 0.0
        %1097 = vmatmul.mubr.f32.gmra.mxu0 %v555
        %v1098 = vpop.f32.mrf.mxu0
        %v1099 = vadd.f32 0.0, %v1098
        %v1100 = vpop.f32.mrf.mxu0
        %1101 = vmatprep.mubr.f32.mxu0 0.0
        %1102 = vmatmul.mubr.f32.gmra.mxu0 %v558
        %v1103 = vpop.f32.mrf.mxu0
        %v1104 = vadd.f32 0.0, %v1103
        %v1105 = vpop.f32.mrf.mxu0
        %1106 = vmatprep.mubr.f32.mxu0 0.0
        %1107 = vmatmul.mubr.f32.gmra.mxu0 %v561
        %v1108 = vpop.f32.mrf.mxu0
        %v1109 = vadd.f32 0.0, %v1108
        %v1110 = vpop.f32.mrf.mxu0
        %1111 = vmatprep.mubr.f32.mxu0 0.0
        %1112 = vmatmul.mubr.f32.gmra.mxu0 %v564
        %v1113 = vpop.f32.mrf.mxu0
        %v1114 = vadd.f32 0.0, %v1113
        %v1115 = vpop.f32.mrf.mxu0
        %1116 = vmatprep.mubr.f32.mxu0 0.0
        %1117 = vmatmul.mubr.f32.gmra.mxu0 %v567
        %v1118 = vpop.f32.mrf.mxu0
        %v1119 = vadd.f32 0.0, %v1118
        %v1120 = vpop.f32.mrf.mxu0
        %1121 = vmatprep.mubr.f32.mxu0 0.0
        %1122 = vmatmul.mubr.f32.gmra.mxu0 %v570
        %v1123 = vpop.f32.mrf.mxu0
        %v1124 = vadd.f32 0.0, %v1123
        %v1125 = vpop.f32.mrf.mxu0
        %1126 = vmatprep.mubr.f32.mxu0 0.0
        %1127 = vmatmul.mubr.f32.gmra.mxu0 %v573
        %v1128 = vpop.f32.mrf.mxu0
        %v1129 = vadd.f32 0.0, %v1128
        %v1130 = vpop.f32.mrf.mxu0
        %1131 = vmatprep.mubr.f32.mxu0 0.0
        %1132 = vmatmul.mubr.f32.gmra.mxu0 %v576
        %v1133 = vpop.f32.mrf.mxu0
        %v1134 = vadd.f32 0.0, %v1133
        %v1135 = vpop.f32.mrf.mxu0
        %1136 = vmatprep.mubr.f32.mxu0 0.0
        %1137 = vmatmul.mubr.f32.gmra.mxu0 %v579
        %v1138 = vpop.f32.mrf.mxu0
        %v1139 = vadd.f32 0.0, %v1138
        %v1140 = vpop.f32.mrf.mxu0
        %1141 = vmatprep.mubr.f32.mxu0 0.0
        %1142 = vmatmul.mubr.f32.gmra.mxu0 %v582
        %v1143 = vpop.f32.mrf.mxu0
        %v1144 = vadd.f32 0.0, %v1143
        %v1145 = vpop.f32.mrf.mxu0
        %1146 = vmatprep.mubr.f32.mxu0 0.0
        %1147 = vmatmul.mubr.f32.gmra.mxu0 %v585
        %v1148 = vpop.f32.mrf.mxu0
        %v1149 = vadd.f32 0.0, %v1148
        %v1150 = vpop.f32.mrf.mxu0
        %1151 = vmatprep.mubr.f32.mxu0 0.0
        %1152 = vmatmul.mubr.f32.gmra.mxu0 %v588
        %v1153 = vpop.f32.mrf.mxu0
        %v1154 = vadd.f32 0.0, %v1153
        %v1155 = vpop.f32.mrf.mxu0
        %1156 = vmatprep.mubr.f32.mxu0 0.0
        %1157 = vmatmul.mubr.f32.gmra.mxu0 %v591
        %v1158 = vpop.f32.mrf.mxu0
        %v1159 = vadd.f32 0.0, %v1158
        %v1160 = vpop.f32.mrf.mxu0
        %1161 = vmatprep.mubr.f32.mxu0 0.0
        %1162 = vmatmul.mubr.f32.gmra.mxu0 %v594
        %v1163 = vpop.f32.mrf.mxu0
        %v1164 = vadd.f32 0.0, %v1163
        %v1165 = vpop.f32.mrf.mxu0
        %1166 = vmatprep.mubr.f32.mxu0 0.0
        %1167 = vmatmul.mubr.f32.gmra.mxu0 %v597
        %v1168 = vpop.f32.mrf.mxu0
        %v1169 = vadd.f32 0.0, %v1168
        %v1170 = vpop.f32.mrf.mxu0
        %1171 = vmatprep.mubr.f32.mxu0 0.0
        %1172 = vmatmul.mubr.f32.gmra.mxu0 %v600
        %v1173 = vpop.f32.mrf.mxu0
        %v1174 = vadd.f32 0.0, %v1173
        %v1175 = vpop.f32.mrf.mxu0
        %1176 = vmatprep.mubr.f32.mxu0 0.0
        %1177 = vmatmul.mubr.f32.gmra.mxu0 %v603
        %v1178 = vpop.f32.mrf.mxu0
        %v1179 = vadd.f32 0.0, %v1178
        %v1180 = vpop.f32.mrf.mxu0
        %1181 = vmatprep.mubr.f32.mxu0 0.0
        %1182 = vmatmul.mubr.f32.gmra.mxu0 %v606
        %v1183 = vpop.f32.mrf.mxu0
        %v1184 = vadd.f32 0.0, %v1183
        %v1185 = vpop.f32.mrf.mxu0
        %1186 = vmatprep.mubr.f32.mxu0 0.0
        %1187 = vmatmul.mubr.f32.gmra.mxu0 %v609
        %v1188 = vpop.f32.mrf.mxu0
        %v1189 = vadd.f32 0.0, %v1188
        %v1190 = vpop.f32.mrf.mxu0
        %1191 = vmatprep.mubr.f32.mxu0 0.0
        %1192 = vmatmul.mubr.f32.gmra.mxu0 %v612
        %v1193 = vpop.f32.mrf.mxu0
        %v1194 = vadd.f32 0.0, %v1193
        %v1195 = vpop.f32.mrf.mxu0
        %1196 = vmatprep.mubr.f32.mxu0 0.0
        %1197 = vmatmul.mubr.f32.gmra.mxu0 %v615
        %v1198 = vpop.f32.mrf.mxu0
        %v1199 = vadd.f32 0.0, %v1198
        %v1200 = vpop.f32.mrf.mxu0
        %1201 = vmatprep.mubr.f32.mxu0 0.0
        %1202 = vmatmul.mubr.f32.gmra.mxu0 %v618
        %v1203 = vpop.f32.mrf.mxu0
        %v1204 = vadd.f32 0.0, %v1203
        %v1205 = vpop.f32.mrf.mxu0
        %1206 = vmatprep.mubr.f32.mxu0 0.0
        %1207 = vmatmul.mubr.f32.gmra.mxu0 %v621
        %v1208 = vpop.f32.mrf.mxu0
        %v1209 = vadd.f32 0.0, %v1208
        %v1210 = vpop.f32.mrf.mxu0
        %1211 = vmatprep.mubr.f32.mxu0 0.0
        %1212 = vmatmul.mubr.f32.gmra.mxu0 %v624
        %v1213 = vpop.f32.mrf.mxu0
        %v1214 = vadd.f32 0.0, %v1213
        %v1215 = vpop.f32.mrf.mxu0
        %1216 = vmatprep.mubr.f32.mxu0 0.0
        %1217 = vmatmul.mubr.f32.gmra.mxu0 %v627
        %v1218 = vpop.f32.mrf.mxu0
        %v1219 = vadd.f32 0.0, %v1218
        %v1220 = vpop.f32.mrf.mxu0
        %1221 = vmatprep.mubr.f32.mxu0 0.0
        %1222 = vmatmul.mubr.f32.gmra.mxu0 %v630
        %v1223 = vpop.f32.mrf.mxu0
        %v1224 = vadd.f32 0.0, %v1223
        %v1225 = vpop.f32.mrf.mxu0
        %1226 = vmatprep.mubr.f32.mxu0 0.0
        %1227 = vmatmul.mubr.f32.gmra.mxu0 %v633
        %v1228 = vpop.f32.mrf.mxu0
        %v1229 = vadd.f32 0.0, %v1228
        %v1230 = vpop.f32.mrf.mxu0
        %1231 = vmatprep.mubr.f32.mxu0 0.0
        %1232 = vmatmul.mubr.f32.gmra.mxu0 %v636
        %v1233 = vpop.f32.mrf.mxu0
        %v1234 = vadd.f32 0.0, %v1233
        %v1235 = vpop.f32.mrf.mxu0
        %1236 = vmatprep.mubr.f32.mxu0 0.0
        %1237 = vmatmul.mubr.f32.gmra.mxu0 %v639
        %v1238 = vpop.f32.mrf.mxu0
        %v1239 = vadd.f32 0.0, %v1238
        %v1240 = vpop.f32.mrf.mxu0
        %1241 = vmatprep.mubr.f32.mxu0 0.0
        %1242 = vmatmul.mubr.f32.gmra.mxu0 %v642
        %v1243 = vpop.f32.mrf.mxu0
        %v1244 = vadd.f32 0.0, %v1243
        %v1245 = vpop.f32.mrf.mxu0
        %1246 = vmatprep.mubr.f32.mxu0 0.0
        %1247 = vmatmul.mubr.f32.gmra.mxu0 %v645
        %v1248 = vpop.f32.mrf.mxu0
        %v1249 = vadd.f32 0.0, %v1248
        %v1250 = vpop.f32.mrf.mxu0
        %1251 = vmatprep.mubr.f32.mxu0 0.0
        %1252 = vmatmul.mubr.f32.gmra.mxu0 %v648
        %v1253 = vpop.f32.mrf.mxu0
        %v1254 = vadd.f32 0.0, %v1253
        %v1255 = vpop.f32.mrf.mxu0
        %1256 = vmatprep.mubr.f32.mxu0 0.0
        %1257 = vmatmul.mubr.f32.gmra.mxu0 %v651
        %v1258 = vpop.f32.mrf.mxu0
        %v1259 = vadd.f32 0.0, %v1258
        %v1260 = vpop.f32.mrf.mxu0
        %1261 = vmatprep.mubr.f32.mxu0 0.0
        %1262 = vmatmul.mubr.f32.gmra.mxu0 %v654
        %v1263 = vpop.f32.mrf.mxu0
        %v1264 = vadd.f32 0.0, %v1263
        %v1265 = vpop.f32.mrf.mxu0
        %1266 = vmatprep.mubr.f32.mxu0 0.0
        %1267 = vmatmul.mubr.f32.gmra.mxu0 %v657
        %v1268 = vpop.f32.mrf.mxu0
        %v1269 = vadd.f32 0.0, %v1268
        %v1270 = vpop.f32.mrf.mxu0
        %1271 = vmatprep.mubr.f32.mxu0 0.0
        %1272 = vmatmul.mubr.f32.gmra.mxu0 %v660
        %v1273 = vpop.f32.mrf.mxu0
        %v1274 = vadd.f32 0.0, %v1273
        %v1275 = vpop.f32.mrf.mxu0
        %1276 = vmatprep.mubr.f32.mxu0 0.0
        %1277 = vmatmul.mubr.f32.gmra.mxu0 %v663
        %v1278 = vpop.f32.mrf.mxu0
        %v1279 = vadd.f32 0.0, %v1278
        %v1280 = vpop.f32.mrf.mxu0
        %1281 = vmatprep.mubr.f32.mxu0 0.0
        %1282 = vmatmul.mubr.f32.gmra.mxu0 %v666
        %v1283 = vpop.f32.mrf.mxu0
        %v1284 = vadd.f32 0.0, %v1283
        %v1285 = vpop.f32.mrf.mxu0
        %1286 = vmatprep.mubr.f32.mxu0 0.0
        %1287 = vmatmul.mubr.f32.gmra.mxu0 %v669
        %v1288 = vpop.f32.mrf.mxu0
        %v1289 = vadd.f32 0.0, %v1288
        %v1290 = vpop.f32.mrf.mxu0
        %1291 = vmatprep.mubr.f32.mxu0 0.0
        %1292 = vmatmul.mubr.f32.gmra.mxu0 %v672
        %v1293 = vpop.f32.mrf.mxu0
        %v1294 = vadd.f32 0.0, %v1293
        %v1295 = vpop.f32.mrf.mxu0
        %1296 = vmatprep.mubr.f32.mxu0 0.0
        %1297 = vmatmul.mubr.f32.gmra.mxu0 %v675
        %v1298 = vpop.f32.mrf.mxu0
        %v1299 = vadd.f32 0.0, %v1298
        %v1300 = vpop.f32.mrf.mxu0
        %1301 = vmatprep.mubr.f32.mxu0 0.0
        %1302 = vmatmul.mubr.f32.gmra.mxu0 %v678
        %v1303 = vpop.f32.mrf.mxu0
        %v1304 = vadd.f32 0.0, %v1303
        %v1305 = vpop.f32.mrf.mxu0
        %1306 = vmatprep.mubr.f32.mxu0 0.0
        %1307 = vmatmul.mubr.f32.gmra.mxu0 %v681
        %v1308 = vpop.f32.mrf.mxu0
        %v1309 = vadd.f32 0.0, %v1308
        %v1310 = vpop.f32.mrf.mxu0
        %1311 = vmatprep.mubr.f32.mxu0 0.0
        %1312 = vmatmul.mubr.f32.gmra.mxu0 %v684
        %v1313 = vpop.f32.mrf.mxu0
        %v1314 = vadd.f32 0.0, %v1313
        %v1315 = vpop.f32.mrf.mxu0
        %1316 = vmatprep.mubr.f32.mxu0 0.0
        %1317 = vmatmul.mubr.f32.gmra.mxu0 %v687
        %v1318 = vpop.f32.mrf.mxu0
        %v1319 = vadd.f32 0.0, %v1318
        %v1320 = vpop.f32.mrf.mxu0
        %1321 = vmatprep.mubr.f32.mxu0 0.0
        %1322 = vmatmul.mubr.f32.gmra.mxu0 %v690
        %v1323 = vpop.f32.mrf.mxu0
        %v1324 = vadd.f32 0.0, %v1323
        %v1325 = vpop.f32.mrf.mxu0
        %1326 = vmatprep.mubr.f32.mxu0 0.0
        %1327 = vmatmul.mubr.f32.gmra.mxu0 %v693
        %v1328 = vpop.f32.mrf.mxu0
        %v1329 = vadd.f32 0.0, %v1328
        %v1330 = vpop.f32.mrf.mxu0
        %1331 = vmatprep.mubr.f32.mxu0 0.0
        %1332 = vmatmul.mubr.f32.gmra.mxu0 %v696
        %v1333 = vpop.f32.mrf.mxu0
        %v1334 = vadd.f32 0.0, %v1333
        %v1335 = vpop.f32.mrf.mxu0
        %1336 = vmatprep.mubr.f32.mxu0 0.0
        %1337 = vmatmul.mubr.f32.gmra.mxu0 %v699
        %v1338 = vpop.f32.mrf.mxu0
        %v1339 = vadd.f32 0.0, %v1338
        %v1340 = vpop.f32.mrf.mxu0
        %1341 = vmatprep.mubr.f32.mxu0 0.0
        %1342 = vmatmul.mubr.f32.gmra.mxu0 %v702
        %v1343 = vpop.f32.mrf.mxu0
        %v1344 = vadd.f32 0.0, %v1343
        %v1345 = vpop.f32.mrf.mxu0
        %1346 = vmatprep.mubr.f32.mxu0 0.0
        %1347 = vmatmul.mubr.f32.gmra.mxu0 %v705
        %v1348 = vpop.f32.mrf.mxu0
        %v1349 = vadd.f32 0.0, %v1348
        %v1350 = vpop.f32.mrf.mxu0
        %1351 = vmatprep.mubr.f32.mxu0 0.0
        %1352 = vmatmul.mubr.f32.gmra.mxu0 %v708
        %v1353 = vpop.f32.mrf.mxu0
        %v1354 = vadd.f32 0.0, %v1353
        %v1355 = vpop.f32.mrf.mxu0
        %1356 = vmatprep.mubr.f32.mxu0 0.0
        %1357 = vmatmul.mubr.f32.gmra.mxu0 %v711
        %v1358 = vpop.f32.mrf.mxu0
        %v1359 = vadd.f32 0.0, %v1358
        %v1360 = vpop.f32.mrf.mxu0
        %1361 = vmatprep.mubr.f32.mxu0 0.0
        %1362 = vmatmul.mubr.f32.gmra.mxu0 %v714
        %v1363 = vpop.f32.mrf.mxu0
        %v1364 = vadd.f32 0.0, %v1363
        %v1365 = vpop.f32.mrf.mxu0
        %1366 = vmatprep.mubr.f32.mxu0 0.0
        %1367 = vmatmul.mubr.f32.gmra.mxu0 %v717
        %v1368 = vpop.f32.mrf.mxu0
        %v1369 = vadd.f32 0.0, %v1368
        %v1370 = vpop.f32.mrf.mxu0
        %1371 = vmatprep.mubr.f32.mxu0 0.0
        %1372 = vmatmul.mubr.f32.gmra.mxu0 %v720
        %v1373 = vpop.f32.mrf.mxu0
        %v1374 = vadd.f32 0.0, %v1373
        %v1375 = vpop.f32.mrf.mxu0
        %1376 = vmatprep.mubr.f32.mxu0 0.0
        %1377 = vmatmul.mubr.f32.gmra.mxu0 %v723
        %v1378 = vpop.f32.mrf.mxu0
        %v1379 = vadd.f32 0.0, %v1378
        %v1380 = vpop.f32.mrf.mxu0
        %1381 = vmatprep.mubr.f32.mxu0 0.0
        %1382 = vmatmul.mubr.f32.gmra.mxu0 %v726
        %v1383 = vpop.f32.mrf.mxu0
        %v1384 = vadd.f32 0.0, %v1383
        %v1385 = vpop.f32.mrf.mxu0
        %1386 = vmatprep.mubr.f32.mxu0 0.0
        %1387 = vmatmul.mubr.f32.gmra.mxu0 %v729
        %v1388 = vpop.f32.mrf.mxu0
        %v1389 = vadd.f32 0.0, %v1388
        %v1390 = vpop.f32.mrf.mxu0
        %1391 = vmatprep.mubr.f32.mxu0 0.0
        %1392 = vmatmul.mubr.f32.gmra.mxu0 %v732
        %v1393 = vpop.f32.mrf.mxu0
        %v1394 = vadd.f32 0.0, %v1393
        %v1395 = vpop.f32.mrf.mxu0
        %1396 = vmatprep.mubr.f32.mxu0 0.0
        %1397 = vmatmul.mubr.f32.gmra.mxu0 %v735
        %v1398 = vpop.f32.mrf.mxu0
        %v1399 = vadd.f32 0.0, %v1398
        %v1400 = vpop.f32.mrf.mxu0
        %1401 = vmatprep.mubr.f32.mxu0 0.0
        %1402 = vmatmul.mubr.f32.gmra.mxu0 %v738
        %v1403 = vpop.f32.mrf.mxu0
        %v1404 = vadd.f32 0.0, %v1403
        %v1405 = vpop.f32.mrf.mxu0
        %1406 = vmatprep.mubr.f32.mxu0 0.0
        %1407 = vmatmul.mubr.f32.gmra.mxu0 %v741
        %v1408 = vpop.f32.mrf.mxu0
        %v1409 = vadd.f32 0.0, %v1408
        %v1410 = vpop.f32.mrf.mxu0
        %1411 = vmatprep.mubr.f32.mxu0 0.0
        %1412 = vmatmul.mubr.f32.gmra.mxu0 %v744
        %v1413 = vpop.f32.mrf.mxu0
        %v1414 = vadd.f32 0.0, %v1413
        %v1415 = vpop.f32.mrf.mxu0
        %1416 = vmatprep.mubr.f32.mxu0 0.0
        %1417 = vmatmul.mubr.f32.gmra.mxu0 %v747
        %v1418 = vpop.f32.mrf.mxu0
        %v1419 = vadd.f32 0.0, %v1418
        %v1420 = vpop.f32.mrf.mxu0
        %1421 = vmatprep.mubr.f32.mxu0 0.0
        %1422 = vmatmul.mubr.f32.gmra.mxu0 %v750
        %v1423 = vpop.f32.mrf.mxu0
        %v1424 = vadd.f32 0.0, %v1423
        %v1425 = vpop.f32.mrf.mxu0
        %1426 = vmatprep.mubr.f32.mxu0 0.0
        %1427 = vmatmul.mubr.f32.gmra.mxu0 %v753
        %v1428 = vpop.f32.mrf.mxu0
        %v1429 = vadd.f32 0.0, %v1428
        %v1430 = vpop.f32.mrf.mxu0
        %1431 = vmatprep.mubr.f32.mxu0 0.0
        %1432 = vmatmul.mubr.f32.gmra.mxu0 %v756
        %v1433 = vpop.f32.mrf.mxu0
        %v1434 = vadd.f32 0.0, %v1433
        %v1435 = vpop.f32.mrf.mxu0
        %1436 = vmatprep.mubr.f32.mxu0 0.0
        %1437 = vmatmul.mubr.f32.gmra.mxu0 %v759
        %v1438 = vpop.f32.mrf.mxu0
        %v1439 = vadd.f32 0.0, %v1438
        %v1440 = vpop.f32.mrf.mxu0
        %1441 = vmatprep.mubr.f32.mxu0 0.0
        %1442 = vmatmul.mubr.f32.gmra.mxu0 %v762
        %v1443 = vpop.f32.mrf.mxu0
        %v1444 = vadd.f32 0.0, %v1443
        %v1445 = vpop.f32.mrf.mxu0
        %1446 = vmatprep.mubr.f32.mxu0 0.0
        %1447 = vmatmul.mubr.f32.gmra.mxu0 %v765
        %v1448 = vpop.f32.mrf.mxu0
        %v1449 = vadd.f32 0.0, %v1448
        %v1450 = vpop.f32.mrf.mxu0
        %1451 = vmatprep.mubr.f32.mxu0 0.0
        %1452 = vmatmul.mubr.f32.gmra.mxu0 %v768
        %v1453 = vpop.f32.mrf.mxu0
        %v1454 = vadd.f32 0.0, %v1453
        %v1455 = vpop.f32.mrf.mxu0
        %1456 = vmatprep.mubr.f32.mxu0 0.0
        %1457 = vmatmul.mubr.f32.gmra.mxu0 %v771
        %v1458 = vpop.f32.mrf.mxu0
        %v1459 = vadd.f32 0.0, %v1458
        %v1460 = vpop.f32.mrf.mxu0
        %1461 = vmatprep.mubr.f32.mxu0 0.0
        %1462 = vmatmul.mubr.f32.gmra.mxu0 %v774
        %v1463 = vpop.f32.mrf.mxu0
        %v1464 = vadd.f32 0.0, %v1463
        %v1465 = vpop.f32.mrf.mxu0
        %1466 = vmatprep.mubr.f32.mxu0 0.0
        %1467 = vmatmul.mubr.f32.gmra.mxu0 %v777
        %v1468 = vpop.f32.mrf.mxu0
        %v1469 = vadd.f32 0.0, %v1468
        %v1470 = vpop.f32.mrf.mxu0
        %1471 = vmatprep.mubr.f32.mxu0 0.0
        %1472 = vmatmul.mubr.f32.gmra.mxu0 %v780
        %v1473 = vpop.f32.mrf.mxu0
        %v1474 = vadd.f32 0.0, %v1473
        %v1475 = vpop.f32.mrf.mxu0
        %1476 = vmatprep.mubr.f32.mxu0 0.0
        %1477 = vmatmul.mubr.f32.gmra.mxu0 %v783
        %v1478 = vpop.f32.mrf.mxu0
        %v1479 = vadd.f32 0.0, %v1478
        %v1480 = vpop.f32.mrf.mxu0
        %1481 = vmatprep.mubr.f32.mxu0 0.0
        %1482 = vmatmul.mubr.f32.gmra.mxu0 %v786
        %v1483 = vpop.f32.mrf.mxu0
        %v1484 = vadd.f32 0.0, %v1483
        %v1485 = vpop.f32.mrf.mxu0
        %1486 = vmatprep.mubr.f32.mxu0 0.0
        %1487 = vmatmul.mubr.f32.gmra.mxu0 %v789
        %v1488 = vpop.f32.mrf.mxu0
        %v1489 = vadd.f32 0.0, %v1488
        %v1490 = vpop.f32.mrf.mxu0
        %1491 = vmatprep.mubr.f32.mxu0 0.0
        %1492 = vmatmul.mubr.f32.gmra.mxu0 %v792
        %v1493 = vpop.f32.mrf.mxu0
        %v1494 = vadd.f32 0.0, %v1493
        %v1495 = vpop.f32.mrf.mxu0
        %1496 = vmatprep.mubr.f32.mxu0 0.0
        %1497 = vmatmul.mubr.f32.gmra.mxu0 %v795
        %v1498 = vpop.f32.mrf.mxu0
        %v1499 = vadd.f32 0.0, %v1498
        %v1500 = vpop.f32.mrf.mxu0
        %1501 = vmatprep.mubr.f32.mxu0 0.0
        %1502 = vmatmul.mubr.f32.gmra.mxu0 %v798
        %v1503 = vpop.f32.mrf.mxu0
        %v1504 = vadd.f32 0.0, %v1503
        %v1505 = vpop.f32.mrf.mxu0
        %1506 = vmatprep.mubr.f32.mxu0 0.0
        %1507 = vmatmul.mubr.f32.gmra.mxu0 %v801
        %v1508 = vpop.f32.mrf.mxu0
        %v1509 = vadd.f32 0.0, %v1508
        %v1510 = vpop.f32.mrf.mxu0
        %1511 = vdwg.mxu0
        %v1512 = vld [vmem:[%s277] sm:$0xff]
        %v1513 = vld [vmem:[%s277 + $0x8] sm:$0xff]
        %v1514 = vld [vmem:[%s277 + $0x10] sm:$0xff]
        %v1515 = vld [vmem:[%s277 + $0x18] sm:$0xff]
        %v1516 = vld [vmem:[%s277 + $0x20] sm:$0xff]
        %v1517 = vld [vmem:[%s277 + $0x28] sm:$0xff]
        %v1518 = vld [vmem:[%s277 + $0x30] sm:$0xff]
        %v1519 = vld [vmem:[%s277 + $0x38] sm:$0xff]
        %v1520 = vld [vmem:[%s277 + $0x40] sm:$0xff]
        %v1521 = vld [vmem:[%s277 + $0x48] sm:$0xff]
        %v1522 = vld [vmem:[%s277 + $0x50] sm:$0xff]
        %v1523 = vld [vmem:[%s277 + $0x58] sm:$0xff]
        %v1524 = vld [vmem:[%s277 + $0x60] sm:$0xff]
        %v1525 = vld [vmem:[%s277 + $0x68] sm:$0xff]
        %v1526 = vld [vmem:[%s277 + $0x70] sm:$0xff]
        %v1527 = vld [vmem:[%s277 + $0x78] sm:$0xff]
        %v1528 = vld [vmem:[%s277 + $0x80] sm:$0xff]
        %v1529 = vld [vmem:[%s277 + $0x88] sm:$0xff]
        %v1530 = vld [vmem:[%s277 + $0x90] sm:$0xff]
        %v1531 = vld [vmem:[%s277 + $0x98] sm:$0xff]
        %v1532 = vld [vmem:[%s277 + $0xa0] sm:$0xff]
        %v1533 = vld [vmem:[%s277 + $0xa8] sm:$0xff]
        %v1534 = vld [vmem:[%s277 + $0xb0] sm:$0xff]
        %v1535 = vld [vmem:[%s277 + $0xb8] sm:$0xff]
        %v1536 = vld [vmem:[%s277 + $0xc0] sm:$0xff]
        %v1537 = vld [vmem:[%s277 + $0xc8] sm:$0xff]
        %v1538 = vld [vmem:[%s277 + $0xd0] sm:$0xff]
        %v1539 = vld [vmem:[%s277 + $0xd8] sm:$0xff]
        %v1540 = vld [vmem:[%s277 + $0xe0] sm:$0xff]
        %v1541 = vld [vmem:[%s277 + $0xe8] sm:$0xff]
        %v1542 = vld [vmem:[%s277 + $0xf0] sm:$0xff]
        %v1543 = vld [vmem:[%s277 + $0xf8] sm:$0xff]
        %v1544 = vld [vmem:[%s277 + $0x100] sm:$0xff]
        %v1545 = vld [vmem:[%s277 + $0x108] sm:$0xff]
        %v1546 = vld [vmem:[%s277 + $0x110] sm:$0xff]
        %v1547 = vld [vmem:[%s277 + $0x118] sm:$0xff]
        %v1548 = vld [vmem:[%s277 + $0x120] sm:$0xff]
        %v1549 = vld [vmem:[%s277 + $0x128] sm:$0xff]
        %v1550 = vld [vmem:[%s277 + $0x130] sm:$0xff]
        %v1551 = vld [vmem:[%s277 + $0x138] sm:$0xff]
        %v1552 = vld [vmem:[%s277 + $0x140] sm:$0xff]
        %v1553 = vld [vmem:[%s277 + $0x148] sm:$0xff]
        %v1554 = vld [vmem:[%s277 + $0x150] sm:$0xff]
        %v1555 = vld [vmem:[%s277 + $0x158] sm:$0xff]
        %v1556 = vld [vmem:[%s277 + $0x160] sm:$0xff]
        %v1557 = vld [vmem:[%s277 + $0x168] sm:$0xff]
        %v1558 = vld [vmem:[%s277 + $0x170] sm:$0xff]
        %v1559 = vld [vmem:[%s277 + $0x178] sm:$0xff]
        %v1560 = vld [vmem:[%s277 + $0x180] sm:$0xff]
        %v1561 = vld [vmem:[%s277 + $0x188] sm:$0xff]
        %v1562 = vld [vmem:[%s277 + $0x190] sm:$0xff]
        %v1563 = vld [vmem:[%s277 + $0x198] sm:$0xff]
        %v1564 = vld [vmem:[%s277 + $0x1a0] sm:$0xff]
        %v1565 = vld [vmem:[%s277 + $0x1a8] sm:$0xff]
        %v1566 = vld [vmem:[%s277 + $0x1b0] sm:$0xff]
        %v1567 = vld [vmem:[%s277 + $0x1b8] sm:$0xff]
        %v1568 = vld [vmem:[%s277 + $0x1c0] sm:$0xff]
        %v1569 = vld [vmem:[%s277 + $0x1c8] sm:$0xff]
        %v1570 = vld [vmem:[%s277 + $0x1d0] sm:$0xff]
        %v1571 = vld [vmem:[%s277 + $0x1d8] sm:$0xff]
        %v1572 = vld [vmem:[%s277 + $0x1e0] sm:$0xff]
        %v1573 = vld [vmem:[%s277 + $0x1e8] sm:$0xff]
        %v1574 = vld [vmem:[%s277 + $0x1f0] sm:$0xff]
        %v1575 = vld [vmem:[%s277 + $0x1f8] sm:$0xff]
        %v1576 = vld [vmem:[%s277 + $0x200] sm:$0xff]
        %v1577 = vld [vmem:[%s277 + $0x208] sm:$0xff]
        %v1578 = vld [vmem:[%s277 + $0x210] sm:$0xff]
        %v1579 = vld [vmem:[%s277 + $0x218] sm:$0xff]
        %v1580 = vld [vmem:[%s277 + $0x220] sm:$0xff]
        %v1581 = vld [vmem:[%s277 + $0x228] sm:$0xff]
        %v1582 = vld [vmem:[%s277 + $0x230] sm:$0xff]
        %v1583 = vld [vmem:[%s277 + $0x238] sm:$0xff]
        %v1584 = vld [vmem:[%s277 + $0x240] sm:$0xff]
        %v1585 = vld [vmem:[%s277 + $0x248] sm:$0xff]
        %v1586 = vld [vmem:[%s277 + $0x250] sm:$0xff]
        %v1587 = vld [vmem:[%s277 + $0x258] sm:$0xff]
        %v1588 = vld [vmem:[%s277 + $0x260] sm:$0xff]
        %v1589 = vld [vmem:[%s277 + $0x268] sm:$0xff]
        %v1590 = vld [vmem:[%s277 + $0x270] sm:$0xff]
        %v1591 = vld [vmem:[%s277 + $0x278] sm:$0xff]
        %v1592 = vld [vmem:[%s277 + $0x280] sm:$0xff]
        %v1593 = vld [vmem:[%s277 + $0x288] sm:$0xff]
        %v1594 = vld [vmem:[%s277 + $0x290] sm:$0xff]
        %v1595 = vld [vmem:[%s277 + $0x298] sm:$0xff]
        %v1596 = vld [vmem:[%s277 + $0x2a0] sm:$0xff]
        %v1597 = vld [vmem:[%s277 + $0x2a8] sm:$0xff]
        %v1598 = vld [vmem:[%s277 + $0x2b0] sm:$0xff]
        %v1599 = vld [vmem:[%s277 + $0x2b8] sm:$0xff]
        %v1600 = vld [vmem:[%s277 + $0x2c0] sm:$0xff]
        %v1601 = vld [vmem:[%s277 + $0x2c8] sm:$0xff]
        %v1602 = vld [vmem:[%s277 + $0x2d0] sm:$0xff]
        %v1603 = vld [vmem:[%s277 + $0x2d8] sm:$0xff]
        %v1604 = vld [vmem:[%s277 + $0x2e0] sm:$0xff]
        %v1605 = vld [vmem:[%s277 + $0x2e8] sm:$0xff]
        %v1606 = vld [vmem:[%s277 + $0x2f0] sm:$0xff]
        %v1607 = vld [vmem:[%s277 + $0x2f8] sm:$0xff]
        %v1608 = vld [vmem:[%s277 + $0x300] sm:$0xff]
        %v1609 = vld [vmem:[%s277 + $0x308] sm:$0xff]
        %v1610 = vld [vmem:[%s277 + $0x310] sm:$0xff]
        %v1611 = vld [vmem:[%s277 + $0x318] sm:$0xff]
        %v1612 = vld [vmem:[%s277 + $0x320] sm:$0xff]
        %v1613 = vld [vmem:[%s277 + $0x328] sm:$0xff]
        %v1614 = vld [vmem:[%s277 + $0x330] sm:$0xff]
        %v1615 = vld [vmem:[%s277 + $0x338] sm:$0xff]
        %v1616 = vld [vmem:[%s277 + $0x340] sm:$0xff]
        %v1617 = vld [vmem:[%s277 + $0x348] sm:$0xff]
        %v1618 = vld [vmem:[%s277 + $0x350] sm:$0xff]
        %v1619 = vld [vmem:[%s277 + $0x358] sm:$0xff]
        %v1620 = vld [vmem:[%s277 + $0x360] sm:$0xff]
        %v1621 = vld [vmem:[%s277 + $0x368] sm:$0xff]
        %v1622 = vld [vmem:[%s277 + $0x370] sm:$0xff]
        %v1623 = vld [vmem:[%s277 + $0x378] sm:$0xff]
        %v1624 = vld [vmem:[%s277 + $0x380] sm:$0xff]
        %v1625 = vld [vmem:[%s277 + $0x388] sm:$0xff]
        %v1626 = vld [vmem:[%s277 + $0x390] sm:$0xff]
        %v1627 = vld [vmem:[%s277 + $0x398] sm:$0xff]
        %v1628 = vld [vmem:[%s277 + $0x3a0] sm:$0xff]
        %v1629 = vld [vmem:[%s277 + $0x3a8] sm:$0xff]
        %v1630 = vld [vmem:[%s277 + $0x3b0] sm:$0xff]
        %v1631 = vld [vmem:[%s277 + $0x3b8] sm:$0xff]
        %v1632 = vld [vmem:[%s277 + $0x3c0] sm:$0xff]
        %v1633 = vld [vmem:[%s277 + $0x3c8] sm:$0xff]
        %v1634 = vld [vmem:[%s277 + $0x3d0] sm:$0xff]
        %v1635 = vld [vmem:[%s277 + $0x3d8] sm:$0xff]
        %v1636 = vld [vmem:[%s277 + $0x3e0] sm:$0xff]
        %v1637 = vld [vmem:[%s277 + $0x3e8] sm:$0xff]
        %v1638 = vld [vmem:[%s277 + $0x3f0] sm:$0xff]
        %v1639 = vld [vmem:[%s277 + $0x3f8] sm:$0xff]
        %v1640 = vld [vmem:[%s2] sm:$0xf]
        %v1642 = vsel %vm418, %v1512, 0
        %v1645 = vsel %vm418, %v1513, 0
        %v1648 = vsel %vm418, %v1514, 0
        %v1651 = vsel %vm418, %v1515, 0
        %v1654 = vsel %vm418, %v1516, 0
        %v1657 = vsel %vm418, %v1517, 0
        %v1660 = vsel %vm418, %v1518, 0
        %v1663 = vsel %vm418, %v1519, 0
        %v1666 = vsel %vm418, %v1520, 0
        %v1669 = vsel %vm418, %v1521, 0
        %v1672 = vsel %vm418, %v1522, 0
        %v1675 = vsel %vm418, %v1523, 0
        %v1678 = vsel %vm418, %v1524, 0
        %v1681 = vsel %vm418, %v1525, 0
        %v1684 = vsel %vm418, %v1526, 0
        %v1687 = vsel %vm418, %v1527, 0
        %v1690 = vsel %vm418, %v1528, 0
        %v1693 = vsel %vm418, %v1529, 0
        %v1696 = vsel %vm418, %v1530, 0
        %v1699 = vsel %vm418, %v1531, 0
        %v1702 = vsel %vm418, %v1532, 0
        %v1705 = vsel %vm418, %v1533, 0
        %v1708 = vsel %vm418, %v1534, 0
        %v1711 = vsel %vm418, %v1535, 0
        %v1714 = vsel %vm418, %v1536, 0
        %v1717 = vsel %vm418, %v1537, 0
        %v1720 = vsel %vm418, %v1538, 0
        %v1723 = vsel %vm418, %v1539, 0
        %v1726 = vsel %vm418, %v1540, 0
        %v1729 = vsel %vm418, %v1541, 0
        %v1732 = vsel %vm418, %v1542, 0
        %v1735 = vsel %vm418, %v1543, 0
        %v1738 = vsel %vm418, %v1544, 0
        %v1741 = vsel %vm418, %v1545, 0
        %v1744 = vsel %vm418, %v1546, 0
        %v1747 = vsel %vm418, %v1547, 0
        %v1750 = vsel %vm418, %v1548, 0
        %v1753 = vsel %vm418, %v1549, 0
        %v1756 = vsel %vm418, %v1550, 0
        %v1759 = vsel %vm418, %v1551, 0
        %v1762 = vsel %vm418, %v1552, 0
        %v1765 = vsel %vm418, %v1553, 0
        %v1768 = vsel %vm418, %v1554, 0
        %v1771 = vsel %vm418, %v1555, 0
        %v1774 = vsel %vm418, %v1556, 0
        %v1777 = vsel %vm418, %v1557, 0
        %v1780 = vsel %vm418, %v1558, 0
        %v1783 = vsel %vm418, %v1559, 0
        %v1786 = vsel %vm418, %v1560, 0
        %v1789 = vsel %vm418, %v1561, 0
        %v1792 = vsel %vm418, %v1562, 0
        %v1795 = vsel %vm418, %v1563, 0
        %v1798 = vsel %vm418, %v1564, 0
        %v1801 = vsel %vm418, %v1565, 0
        %v1804 = vsel %vm418, %v1566, 0
        %v1807 = vsel %vm418, %v1567, 0
        %v1810 = vsel %vm418, %v1568, 0
        %v1813 = vsel %vm418, %v1569, 0
        %v1816 = vsel %vm418, %v1570, 0
        %v1819 = vsel %vm418, %v1571, 0
        %v1822 = vsel %vm418, %v1572, 0
        %v1825 = vsel %vm418, %v1573, 0
        %v1828 = vsel %vm418, %v1574, 0
        %v1831 = vsel %vm418, %v1575, 0
        %v1834 = vsel %vm418, %v1576, 0
        %v1837 = vsel %vm418, %v1577, 0
        %v1840 = vsel %vm418, %v1578, 0
        %v1843 = vsel %vm418, %v1579, 0
        %v1846 = vsel %vm418, %v1580, 0
        %v1849 = vsel %vm418, %v1581, 0
        %v1852 = vsel %vm418, %v1582, 0
        %v1855 = vsel %vm418, %v1583, 0
        %v1858 = vsel %vm418, %v1584, 0
        %v1861 = vsel %vm418, %v1585, 0
        %v1864 = vsel %vm418, %v1586, 0
        %v1867 = vsel %vm418, %v1587, 0
        %v1870 = vsel %vm418, %v1588, 0
        %v1873 = vsel %vm418, %v1589, 0
        %v1876 = vsel %vm418, %v1590, 0
        %v1879 = vsel %vm418, %v1591, 0
        %v1882 = vsel %vm418, %v1592, 0
        %v1885 = vsel %vm418, %v1593, 0
        %v1888 = vsel %vm418, %v1594, 0
        %v1891 = vsel %vm418, %v1595, 0
        %v1894 = vsel %vm418, %v1596, 0
        %v1897 = vsel %vm418, %v1597, 0
        %v1900 = vsel %vm418, %v1598, 0
        %v1903 = vsel %vm418, %v1599, 0
        %v1906 = vsel %vm418, %v1600, 0
        %v1909 = vsel %vm418, %v1601, 0
        %v1912 = vsel %vm418, %v1602, 0
        %v1915 = vsel %vm418, %v1603, 0
        %v1918 = vsel %vm418, %v1604, 0
        %v1921 = vsel %vm418, %v1605, 0
        %v1924 = vsel %vm418, %v1606, 0
        %v1927 = vsel %vm418, %v1607, 0
        %v1930 = vsel %vm418, %v1608, 0
        %v1933 = vsel %vm418, %v1609, 0
        %v1936 = vsel %vm418, %v1610, 0
        %v1939 = vsel %vm418, %v1611, 0
        %v1942 = vsel %vm418, %v1612, 0
        %v1945 = vsel %vm418, %v1613, 0
        %v1948 = vsel %vm418, %v1614, 0
        %v1951 = vsel %vm418, %v1615, 0
        %v1954 = vsel %vm418, %v1616, 0
        %v1957 = vsel %vm418, %v1617, 0
        %v1960 = vsel %vm418, %v1618, 0
        %v1963 = vsel %vm418, %v1619, 0
        %v1966 = vsel %vm418, %v1620, 0
        %v1969 = vsel %vm418, %v1621, 0
        %v1972 = vsel %vm418, %v1622, 0
        %v1975 = vsel %vm418, %v1623, 0
        %v1978 = vsel %vm418, %v1624, 0
        %v1981 = vsel %vm418, %v1625, 0
        %v1984 = vsel %vm418, %v1626, 0
        %v1987 = vsel %vm418, %v1627, 0
        %v1990 = vsel %vm418, %v1628, 0
        %v1993 = vsel %vm418, %v1629, 0
        %v1996 = vsel %vm418, %v1630, 0
        %v1999 = vsel %vm418, %v1631, 0
        %v2002 = vsel %vm418, %v1632, 0
        %v2005 = vsel %vm418, %v1633, 0
        %v2008 = vsel %vm418, %v1634, 0
        %v2011 = vsel %vm418, %v1635, 0
        %v2014 = vsel %vm418, %v1636, 0
        %v2017 = vsel %vm418, %v1637, 0
        %v2020 = vsel %vm418, %v1638, 0
        %v2023 = vsel %vm418, %v1639, 0
        %v2026 = vsel %vm803, %v1640, 0
        %2028 = vmatprep.subr.mxu0 0.0
        %2029 = vmatpush1.msra.mxu0 0.0
        %2030 = vmatprep.subr.mxu0 0.0
        %2031 = vmatpush1.msra.mxu0 0.0
        %2032 = vmatprep.subr.mxu0 0.0
        %2033 = vmatpush1.msra.mxu0 0.0
        %2034 = vmatprep.subr.mxu0 0.0
        %2035 = vmatpush1.msra.mxu0 0.0
        %2036 = vmatprep.subr.mxu0 0.0
        %2037 = vmatpush1.msra.mxu0 0.0
        %2038 = vmatprep.subr.mxu0 0.0
        %2039 = vmatpush1.msra.mxu0 0.0
        %2040 = vmatprep.subr.mxu0 0.0
        %2041 = vmatpush1.msra.mxu0 0.0
        %2042 = vmatprep.subr.mxu0 0.0
        %2043 = vmatpush1.msra.mxu0 0.0
        %2044 = vmatprep.subr.mxu0 0.0
        %2045 = vmatpush1.msra.mxu0 0.0
        %2046 = vmatprep.subr.mxu0 0.0
        %2047 = vmatpush1.msra.mxu0 0.0
        %2048 = vmatprep.subr.mxu0 0.0
        %2049 = vmatpush1.msra.mxu0 0.0
        %2050 = vmatprep.subr.mxu0 0.0
        %2051 = vmatpush1.msra.mxu0 0.0
        %2052 = vmatprep.subr.mxu0 0.0
        %2053 = vmatpush1.msra.mxu0 0.0
        %2054 = vmatprep.subr.mxu0 0.0
        %2055 = vmatpush1.msra.mxu0 0.0
        %2056 = vmatprep.subr.mxu0 0.0
        %2057 = vmatpush1.msra.mxu0 0.0
        %2058 = vmatprep.subr.mxu0 0.0
        %2059 = vmatpush1.msra.mxu0 %v2026
        %2060 = vmatprep.subr.mxu0 0.0
        %2061 = vmatpush2.msra.mxu0 0.0
        %2062 = vmatprep.subr.mxu0 0.0
        %2063 = vmatpush2.msra.mxu0 0.0
        %2064 = vmatprep.subr.mxu0 0.0
        %2065 = vmatpush2.msra.mxu0 0.0
        %2066 = vmatprep.subr.mxu0 0.0
        %2067 = vmatpush2.msra.mxu0 0.0
        %2068 = vmatprep.subr.mxu0 0.0
        %2069 = vmatpush2.msra.mxu0 0.0
        %2070 = vmatprep.subr.mxu0 0.0
        %2071 = vmatpush2.msra.mxu0 0.0
        %2072 = vmatprep.subr.mxu0 0.0
        %2073 = vmatpush2.msra.mxu0 0.0
        %2074 = vmatprep.subr.mxu0 0.0
        %2075 = vmatpush2.msra.mxu0 0.0
        %2076 = vmatprep.subr.mxu0 0.0
        %2077 = vmatpush2.msra.mxu0 0.0
        %2078 = vmatprep.subr.mxu0 0.0
        %2079 = vmatpush2.msra.mxu0 0.0
        %2080 = vmatprep.subr.mxu0 0.0
        %2081 = vmatpush2.msra.mxu0 0.0
        %2082 = vmatprep.subr.mxu0 0.0
        %2083 = vmatpush2.msra.mxu0 0.0
        %2084 = vmatprep.subr.mxu0 0.0
        %2085 = vmatpush2.msra.mxu0 0.0
        %2086 = vmatprep.subr.mxu0 0.0
        %2087 = vmatpush2.msra.mxu0 0.0
        %2088 = vmatprep.subr.mxu0 0.0
        %2089 = vmatpush2.msra.mxu0 0.0
        %2090 = vmatprep.subr.mxu0 0.0
        %2091 = vmatpush2.msra.mxu0 0.0
        %2092 = vmatprep.mubr.f32.mxu0 0.0
        %2093 = vmatmul.mubr.f32.gmra.mxu0 %v1642
        %v2094 = vpop.f32.mrf.mxu0
        %v2095 = vadd.f32 0.0, %v2094
        %v2096 = vpop.f32.mrf.mxu0
        %2097 = vmatprep.mubr.f32.mxu0 0.0
        %2098 = vmatmul.mubr.f32.gmra.mxu0 %v1645
        %v2099 = vpop.f32.mrf.mxu0
        %v2100 = vadd.f32 0.0, %v2099
        %v2101 = vpop.f32.mrf.mxu0
        %2102 = vmatprep.mubr.f32.mxu0 0.0
        %2103 = vmatmul.mubr.f32.gmra.mxu0 %v1648
        %v2104 = vpop.f32.mrf.mxu0
        %v2105 = vadd.f32 0.0, %v2104
        %v2106 = vpop.f32.mrf.mxu0
        %2107 = vmatprep.mubr.f32.mxu0 0.0
        %2108 = vmatmul.mubr.f32.gmra.mxu0 %v1651
        %v2109 = vpop.f32.mrf.mxu0
        %v2110 = vadd.f32 0.0, %v2109
        %v2111 = vpop.f32.mrf.mxu0
        %2112 = vmatprep.mubr.f32.mxu0 0.0
        %2113 = vmatmul.mubr.f32.gmra.mxu0 %v1654
        %v2114 = vpop.f32.mrf.mxu0
        %v2115 = vadd.f32 0.0, %v2114
        %v2116 = vpop.f32.mrf.mxu0
        %2117 = vmatprep.mubr.f32.mxu0 0.0
        %2118 = vmatmul.mubr.f32.gmra.mxu0 %v1657
        %v2119 = vpop.f32.mrf.mxu0
        %v2120 = vadd.f32 0.0, %v2119
        %v2121 = vpop.f32.mrf.mxu0
        %2122 = vmatprep.mubr.f32.mxu0 0.0
        %2123 = vmatmul.mubr.f32.gmra.mxu0 %v1660
        %v2124 = vpop.f32.mrf.mxu0
        %v2125 = vadd.f32 0.0, %v2124
        %v2126 = vpop.f32.mrf.mxu0
        %2127 = vmatprep.mubr.f32.mxu0 0.0
        %2128 = vmatmul.mubr.f32.gmra.mxu0 %v1663
        %v2129 = vpop.f32.mrf.mxu0
        %v2130 = vadd.f32 0.0, %v2129
        %v2131 = vpop.f32.mrf.mxu0
        %2132 = vmatprep.mubr.f32.mxu0 0.0
        %2133 = vmatmul.mubr.f32.gmra.mxu0 %v1666
        %v2134 = vpop.f32.mrf.mxu0
        %v2135 = vadd.f32 0.0, %v2134
        %v2136 = vpop.f32.mrf.mxu0
        %2137 = vmatprep.mubr.f32.mxu0 0.0
        %2138 = vmatmul.mubr.f32.gmra.mxu0 %v1669
        %v2139 = vpop.f32.mrf.mxu0
        %v2140 = vadd.f32 0.0, %v2139
        %v2141 = vpop.f32.mrf.mxu0
        %2142 = vmatprep.mubr.f32.mxu0 0.0
        %2143 = vmatmul.mubr.f32.gmra.mxu0 %v1672
        %v2144 = vpop.f32.mrf.mxu0
        %v2145 = vadd.f32 0.0, %v2144
        %v2146 = vpop.f32.mrf.mxu0
        %2147 = vmatprep.mubr.f32.mxu0 0.0
        %2148 = vmatmul.mubr.f32.gmra.mxu0 %v1675
        %v2149 = vpop.f32.mrf.mxu0
        %v2150 = vadd.f32 0.0, %v2149
        %v2151 = vpop.f32.mrf.mxu0
        %2152 = vmatprep.mubr.f32.mxu0 0.0
        %2153 = vmatmul.mubr.f32.gmra.mxu0 %v1678
        %v2154 = vpop.f32.mrf.mxu0
        %v2155 = vadd.f32 0.0, %v2154
        %v2156 = vpop.f32.mrf.mxu0
        %2157 = vmatprep.mubr.f32.mxu0 0.0
        %2158 = vmatmul.mubr.f32.gmra.mxu0 %v1681
        %v2159 = vpop.f32.mrf.mxu0
        %v2160 = vadd.f32 0.0, %v2159
        %v2161 = vpop.f32.mrf.mxu0
        %2162 = vmatprep.mubr.f32.mxu0 0.0
        %2163 = vmatmul.mubr.f32.gmra.mxu0 %v1684
        %v2164 = vpop.f32.mrf.mxu0
        %v2165 = vadd.f32 0.0, %v2164
        %v2166 = vpop.f32.mrf.mxu0
        %2167 = vmatprep.mubr.f32.mxu0 0.0
        %2168 = vmatmul.mubr.f32.gmra.mxu0 %v1687
        %v2169 = vpop.f32.mrf.mxu0
        %v2170 = vadd.f32 0.0, %v2169
        %v2171 = vpop.f32.mrf.mxu0
        %2172 = vmatprep.mubr.f32.mxu0 0.0
        %2173 = vmatmul.mubr.f32.gmra.mxu0 %v1690
        %v2174 = vpop.f32.mrf.mxu0
        %v2175 = vadd.f32 0.0, %v2174
        %v2176 = vpop.f32.mrf.mxu0
        %2177 = vmatprep.mubr.f32.mxu0 0.0
        %2178 = vmatmul.mubr.f32.gmra.mxu0 %v1693
        %v2179 = vpop.f32.mrf.mxu0
        %v2180 = vadd.f32 0.0, %v2179
        %v2181 = vpop.f32.mrf.mxu0
        %2182 = vmatprep.mubr.f32.mxu0 0.0
        %2183 = vmatmul.mubr.f32.gmra.mxu0 %v1696
        %v2184 = vpop.f32.mrf.mxu0
        %v2185 = vadd.f32 0.0, %v2184
        %v2186 = vpop.f32.mrf.mxu0
        %2187 = vmatprep.mubr.f32.mxu0 0.0
        %2188 = vmatmul.mubr.f32.gmra.mxu0 %v1699
        %v2189 = vpop.f32.mrf.mxu0
        %v2190 = vadd.f32 0.0, %v2189
        %v2191 = vpop.f32.mrf.mxu0
        %2192 = vmatprep.mubr.f32.mxu0 0.0
        %2193 = vmatmul.mubr.f32.gmra.mxu0 %v1702
        %v2194 = vpop.f32.mrf.mxu0
        %v2195 = vadd.f32 0.0, %v2194
        %v2196 = vpop.f32.mrf.mxu0
        %2197 = vmatprep.mubr.f32.mxu0 0.0
        %2198 = vmatmul.mubr.f32.gmra.mxu0 %v1705
        %v2199 = vpop.f32.mrf.mxu0
        %v2200 = vadd.f32 0.0, %v2199
        %v2201 = vpop.f32.mrf.mxu0
        %2202 = vmatprep.mubr.f32.mxu0 0.0
        %2203 = vmatmul.mubr.f32.gmra.mxu0 %v1708
        %v2204 = vpop.f32.mrf.mxu0
        %v2205 = vadd.f32 0.0, %v2204
        %v2206 = vpop.f32.mrf.mxu0
        %2207 = vmatprep.mubr.f32.mxu0 0.0
        %2208 = vmatmul.mubr.f32.gmra.mxu0 %v1711
        %v2209 = vpop.f32.mrf.mxu0
        %v2210 = vadd.f32 0.0, %v2209
        %v2211 = vpop.f32.mrf.mxu0
        %2212 = vmatprep.mubr.f32.mxu0 0.0
        %2213 = vmatmul.mubr.f32.gmra.mxu0 %v1714
        %v2214 = vpop.f32.mrf.mxu0
        %v2215 = vadd.f32 0.0, %v2214
        %v2216 = vpop.f32.mrf.mxu0
        %2217 = vmatprep.mubr.f32.mxu0 0.0
        %2218 = vmatmul.mubr.f32.gmra.mxu0 %v1717
        %v2219 = vpop.f32.mrf.mxu0
        %v2220 = vadd.f32 0.0, %v2219
        %v2221 = vpop.f32.mrf.mxu0
        %2222 = vmatprep.mubr.f32.mxu0 0.0
        %2223 = vmatmul.mubr.f32.gmra.mxu0 %v1720
        %v2224 = vpop.f32.mrf.mxu0
        %v2225 = vadd.f32 0.0, %v2224
        %v2226 = vpop.f32.mrf.mxu0
        %2227 = vmatprep.mubr.f32.mxu0 0.0
        %2228 = vmatmul.mubr.f32.gmra.mxu0 %v1723
        %v2229 = vpop.f32.mrf.mxu0
        %v2230 = vadd.f32 0.0, %v2229
        %v2231 = vpop.f32.mrf.mxu0
        %2232 = vmatprep.mubr.f32.mxu0 0.0
        %2233 = vmatmul.mubr.f32.gmra.mxu0 %v1726
        %v2234 = vpop.f32.mrf.mxu0
        %v2235 = vadd.f32 0.0, %v2234
        %v2236 = vpop.f32.mrf.mxu0
        %2237 = vmatprep.mubr.f32.mxu0 0.0
        %2238 = vmatmul.mubr.f32.gmra.mxu0 %v1729
        %v2239 = vpop.f32.mrf.mxu0
        %v2240 = vadd.f32 0.0, %v2239
        %v2241 = vpop.f32.mrf.mxu0
        %2242 = vmatprep.mubr.f32.mxu0 0.0
        %2243 = vmatmul.mubr.f32.gmra.mxu0 %v1732
        %v2244 = vpop.f32.mrf.mxu0
        %v2245 = vadd.f32 0.0, %v2244
        %v2246 = vpop.f32.mrf.mxu0
        %2247 = vmatprep.mubr.f32.mxu0 0.0
        %2248 = vmatmul.mubr.f32.gmra.mxu0 %v1735
        %v2249 = vpop.f32.mrf.mxu0
        %v2250 = vadd.f32 0.0, %v2249
        %v2251 = vpop.f32.mrf.mxu0
        %2252 = vmatprep.mubr.f32.mxu0 0.0
        %2253 = vmatmul.mubr.f32.gmra.mxu0 %v1738
        %v2254 = vpop.f32.mrf.mxu0
        %v2255 = vadd.f32 0.0, %v2254
        %v2256 = vpop.f32.mrf.mxu0
        %2257 = vmatprep.mubr.f32.mxu0 0.0
        %2258 = vmatmul.mubr.f32.gmra.mxu0 %v1741
        %v2259 = vpop.f32.mrf.mxu0
        %v2260 = vadd.f32 0.0, %v2259
        %v2261 = vpop.f32.mrf.mxu0
        %2262 = vmatprep.mubr.f32.mxu0 0.0
        %2263 = vmatmul.mubr.f32.gmra.mxu0 %v1744
        %v2264 = vpop.f32.mrf.mxu0
        %v2265 = vadd.f32 0.0, %v2264
        %v2266 = vpop.f32.mrf.mxu0
        %2267 = vmatprep.mubr.f32.mxu0 0.0
        %2268 = vmatmul.mubr.f32.gmra.mxu0 %v1747
        %v2269 = vpop.f32.mrf.mxu0
        %v2270 = vadd.f32 0.0, %v2269
        %v2271 = vpop.f32.mrf.mxu0
        %2272 = vmatprep.mubr.f32.mxu0 0.0
        %2273 = vmatmul.mubr.f32.gmra.mxu0 %v1750
        %v2274 = vpop.f32.mrf.mxu0
        %v2275 = vadd.f32 0.0, %v2274
        %v2276 = vpop.f32.mrf.mxu0
        %2277 = vmatprep.mubr.f32.mxu0 0.0
        %2278 = vmatmul.mubr.f32.gmra.mxu0 %v1753
        %v2279 = vpop.f32.mrf.mxu0
        %v2280 = vadd.f32 0.0, %v2279
        %v2281 = vpop.f32.mrf.mxu0
        %2282 = vmatprep.mubr.f32.mxu0 0.0
        %2283 = vmatmul.mubr.f32.gmra.mxu0 %v1756
        %v2284 = vpop.f32.mrf.mxu0
        %v2285 = vadd.f32 0.0, %v2284
        %v2286 = vpop.f32.mrf.mxu0
        %2287 = vmatprep.mubr.f32.mxu0 0.0
        %2288 = vmatmul.mubr.f32.gmra.mxu0 %v1759
        %v2289 = vpop.f32.mrf.mxu0
        %v2290 = vadd.f32 0.0, %v2289
        %v2291 = vpop.f32.mrf.mxu0
        %2292 = vmatprep.mubr.f32.mxu0 0.0
        %2293 = vmatmul.mubr.f32.gmra.mxu0 %v1762
        %v2294 = vpop.f32.mrf.mxu0
        %v2295 = vadd.f32 0.0, %v2294
        %v2296 = vpop.f32.mrf.mxu0
        %2297 = vmatprep.mubr.f32.mxu0 0.0
        %2298 = vmatmul.mubr.f32.gmra.mxu0 %v1765
        %v2299 = vpop.f32.mrf.mxu0
        %v2300 = vadd.f32 0.0, %v2299
        %v2301 = vpop.f32.mrf.mxu0
        %2302 = vmatprep.mubr.f32.mxu0 0.0
        %2303 = vmatmul.mubr.f32.gmra.mxu0 %v1768
        %v2304 = vpop.f32.mrf.mxu0
        %v2305 = vadd.f32 0.0, %v2304
        %v2306 = vpop.f32.mrf.mxu0
        %2307 = vmatprep.mubr.f32.mxu0 0.0
        %2308 = vmatmul.mubr.f32.gmra.mxu0 %v1771
        %v2309 = vpop.f32.mrf.mxu0
        %v2310 = vadd.f32 0.0, %v2309
        %v2311 = vpop.f32.mrf.mxu0
        %2312 = vmatprep.mubr.f32.mxu0 0.0
        %2313 = vmatmul.mubr.f32.gmra.mxu0 %v1774
        %v2314 = vpop.f32.mrf.mxu0
        %v2315 = vadd.f32 0.0, %v2314
        %v2316 = vpop.f32.mrf.mxu0
        %2317 = vmatprep.mubr.f32.mxu0 0.0
        %2318 = vmatmul.mubr.f32.gmra.mxu0 %v1777
        %v2319 = vpop.f32.mrf.mxu0
        %v2320 = vadd.f32 0.0, %v2319
        %v2321 = vpop.f32.mrf.mxu0
        %2322 = vmatprep.mubr.f32.mxu0 0.0
        %2323 = vmatmul.mubr.f32.gmra.mxu0 %v1780
        %v2324 = vpop.f32.mrf.mxu0
        %v2325 = vadd.f32 0.0, %v2324
        %v2326 = vpop.f32.mrf.mxu0
        %2327 = vmatprep.mubr.f32.mxu0 0.0
        %2328 = vmatmul.mubr.f32.gmra.mxu0 %v1783
        %v2329 = vpop.f32.mrf.mxu0
        %v2330 = vadd.f32 0.0, %v2329
        %v2331 = vpop.f32.mrf.mxu0
        %2332 = vmatprep.mubr.f32.mxu0 0.0
        %2333 = vmatmul.mubr.f32.gmra.mxu0 %v1786
        %v2334 = vpop.f32.mrf.mxu0
        %v2335 = vadd.f32 0.0, %v2334
        %v2336 = vpop.f32.mrf.mxu0
        %2337 = vmatprep.mubr.f32.mxu0 0.0
        %2338 = vmatmul.mubr.f32.gmra.mxu0 %v1789
        %v2339 = vpop.f32.mrf.mxu0
        %v2340 = vadd.f32 0.0, %v2339
        %v2341 = vpop.f32.mrf.mxu0
        %2342 = vmatprep.mubr.f32.mxu0 0.0
        %2343 = vmatmul.mubr.f32.gmra.mxu0 %v1792
        %v2344 = vpop.f32.mrf.mxu0
        %v2345 = vadd.f32 0.0, %v2344
        %v2346 = vpop.f32.mrf.mxu0
        %2347 = vmatprep.mubr.f32.mxu0 0.0
        %2348 = vmatmul.mubr.f32.gmra.mxu0 %v1795
        %v2349 = vpop.f32.mrf.mxu0
        %v2350 = vadd.f32 0.0, %v2349
        %v2351 = vpop.f32.mrf.mxu0
        %2352 = vmatprep.mubr.f32.mxu0 0.0
        %2353 = vmatmul.mubr.f32.gmra.mxu0 %v1798
        %v2354 = vpop.f32.mrf.mxu0
        %v2355 = vadd.f32 0.0, %v2354
        %v2356 = vpop.f32.mrf.mxu0
        %2357 = vmatprep.mubr.f32.mxu0 0.0
        %2358 = vmatmul.mubr.f32.gmra.mxu0 %v1801
        %v2359 = vpop.f32.mrf.mxu0
        %v2360 = vadd.f32 0.0, %v2359
        %v2361 = vpop.f32.mrf.mxu0
        %2362 = vmatprep.mubr.f32.mxu0 0.0
        %2363 = vmatmul.mubr.f32.gmra.mxu0 %v1804
        %v2364 = vpop.f32.mrf.mxu0
        %v2365 = vadd.f32 0.0, %v2364
        %v2366 = vpop.f32.mrf.mxu0
        %2367 = vmatprep.mubr.f32.mxu0 0.0
        %2368 = vmatmul.mubr.f32.gmra.mxu0 %v1807
        %v2369 = vpop.f32.mrf.mxu0
        %v2370 = vadd.f32 0.0, %v2369
        %v2371 = vpop.f32.mrf.mxu0
        %2372 = vmatprep.mubr.f32.mxu0 0.0
        %2373 = vmatmul.mubr.f32.gmra.mxu0 %v1810
        %v2374 = vpop.f32.mrf.mxu0
        %v2375 = vadd.f32 0.0, %v2374
        %v2376 = vpop.f32.mrf.mxu0
        %2377 = vmatprep.mubr.f32.mxu0 0.0
        %2378 = vmatmul.mubr.f32.gmra.mxu0 %v1813
        %v2379 = vpop.f32.mrf.mxu0
        %v2380 = vadd.f32 0.0, %v2379
        %v2381 = vpop.f32.mrf.mxu0
        %2382 = vmatprep.mubr.f32.mxu0 0.0
        %2383 = vmatmul.mubr.f32.gmra.mxu0 %v1816
        %v2384 = vpop.f32.mrf.mxu0
        %v2385 = vadd.f32 0.0, %v2384
        %v2386 = vpop.f32.mrf.mxu0
        %2387 = vmatprep.mubr.f32.mxu0 0.0
        %2388 = vmatmul.mubr.f32.gmra.mxu0 %v1819
        %v2389 = vpop.f32.mrf.mxu0
        %v2390 = vadd.f32 0.0, %v2389
        %v2391 = vpop.f32.mrf.mxu0
        %2392 = vmatprep.mubr.f32.mxu0 0.0
        %2393 = vmatmul.mubr.f32.gmra.mxu0 %v1822
        %v2394 = vpop.f32.mrf.mxu0
        %v2395 = vadd.f32 0.0, %v2394
        %v2396 = vpop.f32.mrf.mxu0
        %2397 = vmatprep.mubr.f32.mxu0 0.0
        %2398 = vmatmul.mubr.f32.gmra.mxu0 %v1825
        %v2399 = vpop.f32.mrf.mxu0
        %v2400 = vadd.f32 0.0, %v2399
        %v2401 = vpop.f32.mrf.mxu0
        %2402 = vmatprep.mubr.f32.mxu0 0.0
        %2403 = vmatmul.mubr.f32.gmra.mxu0 %v1828
        %v2404 = vpop.f32.mrf.mxu0
        %v2405 = vadd.f32 0.0, %v2404
        %v2406 = vpop.f32.mrf.mxu0
        %2407 = vmatprep.mubr.f32.mxu0 0.0
        %2408 = vmatmul.mubr.f32.gmra.mxu0 %v1831
        %v2409 = vpop.f32.mrf.mxu0
        %v2410 = vadd.f32 0.0, %v2409
        %v2411 = vpop.f32.mrf.mxu0
        %2412 = vmatprep.mubr.f32.mxu0 0.0
        %2413 = vmatmul.mubr.f32.gmra.mxu0 %v1834
        %v2414 = vpop.f32.mrf.mxu0
        %v2415 = vadd.f32 0.0, %v2414
        %v2416 = vpop.f32.mrf.mxu0
        %2417 = vmatprep.mubr.f32.mxu0 0.0
        %2418 = vmatmul.mubr.f32.gmra.mxu0 %v1837
        %v2419 = vpop.f32.mrf.mxu0
        %v2420 = vadd.f32 0.0, %v2419
        %v2421 = vpop.f32.mrf.mxu0
        %2422 = vmatprep.mubr.f32.mxu0 0.0
        %2423 = vmatmul.mubr.f32.gmra.mxu0 %v1840
        %v2424 = vpop.f32.mrf.mxu0
        %v2425 = vadd.f32 0.0, %v2424
        %v2426 = vpop.f32.mrf.mxu0
        %2427 = vmatprep.mubr.f32.mxu0 0.0
        %2428 = vmatmul.mubr.f32.gmra.mxu0 %v1843
        %v2429 = vpop.f32.mrf.mxu0
        %v2430 = vadd.f32 0.0, %v2429
        %v2431 = vpop.f32.mrf.mxu0
        %2432 = vmatprep.mubr.f32.mxu0 0.0
        %2433 = vmatmul.mubr.f32.gmra.mxu0 %v1846
        %v2434 = vpop.f32.mrf.mxu0
        %v2435 = vadd.f32 0.0, %v2434
        %v2436 = vpop.f32.mrf.mxu0
        %2437 = vmatprep.mubr.f32.mxu0 0.0
        %2438 = vmatmul.mubr.f32.gmra.mxu0 %v1849
        %v2439 = vpop.f32.mrf.mxu0
        %v2440 = vadd.f32 0.0, %v2439
        %v2441 = vpop.f32.mrf.mxu0
        %2442 = vmatprep.mubr.f32.mxu0 0.0
        %2443 = vmatmul.mubr.f32.gmra.mxu0 %v1852
        %v2444 = vpop.f32.mrf.mxu0
        %v2445 = vadd.f32 0.0, %v2444
        %v2446 = vpop.f32.mrf.mxu0
        %2447 = vmatprep.mubr.f32.mxu0 0.0
        %2448 = vmatmul.mubr.f32.gmra.mxu0 %v1855
        %v2449 = vpop.f32.mrf.mxu0
        %v2450 = vadd.f32 0.0, %v2449
        %v2451 = vpop.f32.mrf.mxu0
        %2452 = vmatprep.mubr.f32.mxu0 0.0
        %2453 = vmatmul.mubr.f32.gmra.mxu0 %v1858
        %v2454 = vpop.f32.mrf.mxu0
        %v2455 = vadd.f32 0.0, %v2454
        %v2456 = vpop.f32.mrf.mxu0
        %2457 = vmatprep.mubr.f32.mxu0 0.0
        %2458 = vmatmul.mubr.f32.gmra.mxu0 %v1861
        %v2459 = vpop.f32.mrf.mxu0
        %v2460 = vadd.f32 0.0, %v2459
        %v2461 = vpop.f32.mrf.mxu0
        %2462 = vmatprep.mubr.f32.mxu0 0.0
        %2463 = vmatmul.mubr.f32.gmra.mxu0 %v1864
        %v2464 = vpop.f32.mrf.mxu0
        %v2465 = vadd.f32 0.0, %v2464
        %v2466 = vpop.f32.mrf.mxu0
        %2467 = vmatprep.mubr.f32.mxu0 0.0
        %2468 = vmatmul.mubr.f32.gmra.mxu0 %v1867
        %v2469 = vpop.f32.mrf.mxu0
        %v2470 = vadd.f32 0.0, %v2469
        %v2471 = vpop.f32.mrf.mxu0
        %2472 = vmatprep.mubr.f32.mxu0 0.0
        %2473 = vmatmul.mubr.f32.gmra.mxu0 %v1870
        %v2474 = vpop.f32.mrf.mxu0
        %v2475 = vadd.f32 0.0, %v2474
        %v2476 = vpop.f32.mrf.mxu0
        %2477 = vmatprep.mubr.f32.mxu0 0.0
        %2478 = vmatmul.mubr.f32.gmra.mxu0 %v1873
        %v2479 = vpop.f32.mrf.mxu0
        %v2480 = vadd.f32 0.0, %v2479
        %v2481 = vpop.f32.mrf.mxu0
        %2482 = vmatprep.mubr.f32.mxu0 0.0
        %2483 = vmatmul.mubr.f32.gmra.mxu0 %v1876
        %v2484 = vpop.f32.mrf.mxu0
        %v2485 = vadd.f32 0.0, %v2484
        %v2486 = vpop.f32.mrf.mxu0
        %2487 = vmatprep.mubr.f32.mxu0 0.0
        %2488 = vmatmul.mubr.f32.gmra.mxu0 %v1879
        %v2489 = vpop.f32.mrf.mxu0
        %v2490 = vadd.f32 0.0, %v2489
        %v2491 = vpop.f32.mrf.mxu0
        %2492 = vmatprep.mubr.f32.mxu0 0.0
        %2493 = vmatmul.mubr.f32.gmra.mxu0 %v1882
        %v2494 = vpop.f32.mrf.mxu0
        %v2495 = vadd.f32 0.0, %v2494
        %v2496 = vpop.f32.mrf.mxu0
        %2497 = vmatprep.mubr.f32.mxu0 0.0
        %2498 = vmatmul.mubr.f32.gmra.mxu0 %v1885
        %v2499 = vpop.f32.mrf.mxu0
        %v2500 = vadd.f32 0.0, %v2499
        %v2501 = vpop.f32.mrf.mxu0
        %2502 = vmatprep.mubr.f32.mxu0 0.0
        %2503 = vmatmul.mubr.f32.gmra.mxu0 %v1888
        %v2504 = vpop.f32.mrf.mxu0
        %v2505 = vadd.f32 0.0, %v2504
        %v2506 = vpop.f32.mrf.mxu0
        %2507 = vmatprep.mubr.f32.mxu0 0.0
        %2508 = vmatmul.mubr.f32.gmra.mxu0 %v1891
        %v2509 = vpop.f32.mrf.mxu0
        %v2510 = vadd.f32 0.0, %v2509
        %v2511 = vpop.f32.mrf.mxu0
        %2512 = vmatprep.mubr.f32.mxu0 0.0
        %2513 = vmatmul.mubr.f32.gmra.mxu0 %v1894
        %v2514 = vpop.f32.mrf.mxu0
        %v2515 = vadd.f32 0.0, %v2514
        %v2516 = vpop.f32.mrf.mxu0
        %2517 = vmatprep.mubr.f32.mxu0 0.0
        %2518 = vmatmul.mubr.f32.gmra.mxu0 %v1897
        %v2519 = vpop.f32.mrf.mxu0
        %v2520 = vadd.f32 0.0, %v2519
        %v2521 = vpop.f32.mrf.mxu0
        %2522 = vmatprep.mubr.f32.mxu0 0.0
        %2523 = vmatmul.mubr.f32.gmra.mxu0 %v1900
        %v2524 = vpop.f32.mrf.mxu0
        %v2525 = vadd.f32 0.0, %v2524
        %v2526 = vpop.f32.mrf.mxu0
        %2527 = vmatprep.mubr.f32.mxu0 0.0
        %2528 = vmatmul.mubr.f32.gmra.mxu0 %v1903
        %v2529 = vpop.f32.mrf.mxu0
        %v2530 = vadd.f32 0.0, %v2529
        %v2531 = vpop.f32.mrf.mxu0
        %2532 = vmatprep.mubr.f32.mxu0 0.0
        %2533 = vmatmul.mubr.f32.gmra.mxu0 %v1906
        %v2534 = vpop.f32.mrf.mxu0
        %v2535 = vadd.f32 0.0, %v2534
        %v2536 = vpop.f32.mrf.mxu0
        %2537 = vmatprep.mubr.f32.mxu0 0.0
        %2538 = vmatmul.mubr.f32.gmra.mxu0 %v1909
        %v2539 = vpop.f32.mrf.mxu0
        %v2540 = vadd.f32 0.0, %v2539
        %v2541 = vpop.f32.mrf.mxu0
        %2542 = vmatprep.mubr.f32.mxu0 0.0
        %2543 = vmatmul.mubr.f32.gmra.mxu0 %v1912
        %v2544 = vpop.f32.mrf.mxu0
        %v2545 = vadd.f32 0.0, %v2544
        %v2546 = vpop.f32.mrf.mxu0
        %2547 = vmatprep.mubr.f32.mxu0 0.0
        %2548 = vmatmul.mubr.f32.gmra.mxu0 %v1915
        %v2549 = vpop.f32.mrf.mxu0
        %v2550 = vadd.f32 0.0, %v2549
        %v2551 = vpop.f32.mrf.mxu0
        %2552 = vmatprep.mubr.f32.mxu0 0.0
        %2553 = vmatmul.mubr.f32.gmra.mxu0 %v1918
        %v2554 = vpop.f32.mrf.mxu0
        %v2555 = vadd.f32 0.0, %v2554
        %v2556 = vpop.f32.mrf.mxu0
        %2557 = vmatprep.mubr.f32.mxu0 0.0
        %2558 = vmatmul.mubr.f32.gmra.mxu0 %v1921
        %v2559 = vpop.f32.mrf.mxu0
        %v2560 = vadd.f32 0.0, %v2559
        %v2561 = vpop.f32.mrf.mxu0
        %2562 = vmatprep.mubr.f32.mxu0 0.0
        %2563 = vmatmul.mubr.f32.gmra.mxu0 %v1924
        %v2564 = vpop.f32.mrf.mxu0
        %v2565 = vadd.f32 0.0, %v2564
        %v2566 = vpop.f32.mrf.mxu0
        %2567 = vmatprep.mubr.f32.mxu0 0.0
        %2568 = vmatmul.mubr.f32.gmra.mxu0 %v1927
        %v2569 = vpop.f32.mrf.mxu0
        %v2570 = vadd.f32 0.0, %v2569
        %v2571 = vpop.f32.mrf.mxu0
        %2572 = vmatprep.mubr.f32.mxu0 0.0
        %2573 = vmatmul.mubr.f32.gmra.mxu0 %v1930
        %v2574 = vpop.f32.mrf.mxu0
        %v2575 = vadd.f32 0.0, %v2574
        %v2576 = vpop.f32.mrf.mxu0
        %2577 = vmatprep.mubr.f32.mxu0 0.0
        %2578 = vmatmul.mubr.f32.gmra.mxu0 %v1933
        %v2579 = vpop.f32.mrf.mxu0
        %v2580 = vadd.f32 0.0, %v2579
        %v2581 = vpop.f32.mrf.mxu0
        %2582 = vmatprep.mubr.f32.mxu0 0.0
        %2583 = vmatmul.mubr.f32.gmra.mxu0 %v1936
        %v2584 = vpop.f32.mrf.mxu0
        %v2585 = vadd.f32 0.0, %v2584
        %v2586 = vpop.f32.mrf.mxu0
        %2587 = vmatprep.mubr.f32.mxu0 0.0
        %2588 = vmatmul.mubr.f32.gmra.mxu0 %v1939
        %v2589 = vpop.f32.mrf.mxu0
        %v2590 = vadd.f32 0.0, %v2589
        %v2591 = vpop.f32.mrf.mxu0
        %2592 = vmatprep.mubr.f32.mxu0 0.0
        %2593 = vmatmul.mubr.f32.gmra.mxu0 %v1942
        %v2594 = vpop.f32.mrf.mxu0
        %v2595 = vadd.f32 0.0, %v2594
        %v2596 = vpop.f32.mrf.mxu0
        %2597 = vmatprep.mubr.f32.mxu0 0.0
        %2598 = vmatmul.mubr.f32.gmra.mxu0 %v1945
        %v2599 = vpop.f32.mrf.mxu0
        %v2600 = vadd.f32 0.0, %v2599
        %v2601 = vpop.f32.mrf.mxu0
        %2602 = vmatprep.mubr.f32.mxu0 0.0
        %2603 = vmatmul.mubr.f32.gmra.mxu0 %v1948
        %v2604 = vpop.f32.mrf.mxu0
        %v2605 = vadd.f32 0.0, %v2604
        %v2606 = vpop.f32.mrf.mxu0
        %2607 = vmatprep.mubr.f32.mxu0 0.0
        %2608 = vmatmul.mubr.f32.gmra.mxu0 %v1951
        %v2609 = vpop.f32.mrf.mxu0
        %v2610 = vadd.f32 0.0, %v2609
        %v2611 = vpop.f32.mrf.mxu0
        %2612 = vmatprep.mubr.f32.mxu0 0.0
        %2613 = vmatmul.mubr.f32.gmra.mxu0 %v1954
        %v2614 = vpop.f32.mrf.mxu0
        %v2615 = vadd.f32 0.0, %v2614
        %v2616 = vpop.f32.mrf.mxu0
        %2617 = vmatprep.mubr.f32.mxu0 0.0
        %2618 = vmatmul.mubr.f32.gmra.mxu0 %v1957
        %v2619 = vpop.f32.mrf.mxu0
        %v2620 = vadd.f32 0.0, %v2619
        %v2621 = vpop.f32.mrf.mxu0
        %2622 = vmatprep.mubr.f32.mxu0 0.0
        %2623 = vmatmul.mubr.f32.gmra.mxu0 %v1960
        %v2624 = vpop.f32.mrf.mxu0
        %v2625 = vadd.f32 0.0, %v2624
        %v2626 = vpop.f32.mrf.mxu0
        %2627 = vmatprep.mubr.f32.mxu0 0.0
        %2628 = vmatmul.mubr.f32.gmra.mxu0 %v1963
        %v2629 = vpop.f32.mrf.mxu0
        %v2630 = vadd.f32 0.0, %v2629
        %v2631 = vpop.f32.mrf.mxu0
        %2632 = vmatprep.mubr.f32.mxu0 0.0
        %2633 = vmatmul.mubr.f32.gmra.mxu0 %v1966
        %v2634 = vpop.f32.mrf.mxu0
        %v2635 = vadd.f32 0.0, %v2634
        %v2636 = vpop.f32.mrf.mxu0
        %2637 = vmatprep.mubr.f32.mxu0 0.0
        %2638 = vmatmul.mubr.f32.gmra.mxu0 %v1969
        %v2639 = vpop.f32.mrf.mxu0
        %v2640 = vadd.f32 0.0, %v2639
        %v2641 = vpop.f32.mrf.mxu0
        %2642 = vmatprep.mubr.f32.mxu0 0.0
        %2643 = vmatmul.mubr.f32.gmra.mxu0 %v1972
        %v2644 = vpop.f32.mrf.mxu0
        %v2645 = vadd.f32 0.0, %v2644
        %v2646 = vpop.f32.mrf.mxu0
        %2647 = vmatprep.mubr.f32.mxu0 0.0
        %2648 = vmatmul.mubr.f32.gmra.mxu0 %v1975
        %v2649 = vpop.f32.mrf.mxu0
        %v2650 = vadd.f32 0.0, %v2649
        %v2651 = vpop.f32.mrf.mxu0
        %2652 = vmatprep.mubr.f32.mxu0 0.0
        %2653 = vmatmul.mubr.f32.gmra.mxu0 %v1978
        %v2654 = vpop.f32.mrf.mxu0
        %v2655 = vadd.f32 0.0, %v2654
        %v2656 = vpop.f32.mrf.mxu0
        %2657 = vmatprep.mubr.f32.mxu0 0.0
        %2658 = vmatmul.mubr.f32.gmra.mxu0 %v1981
        %v2659 = vpop.f32.mrf.mxu0
        %v2660 = vadd.f32 0.0, %v2659
        %v2661 = vpop.f32.mrf.mxu0
        %2662 = vmatprep.mubr.f32.mxu0 0.0
        %2663 = vmatmul.mubr.f32.gmra.mxu0 %v1984
        %v2664 = vpop.f32.mrf.mxu0
        %v2665 = vadd.f32 0.0, %v2664
        %v2666 = vpop.f32.mrf.mxu0
        %2667 = vmatprep.mubr.f32.mxu0 0.0
        %2668 = vmatmul.mubr.f32.gmra.mxu0 %v1987
        %v2669 = vpop.f32.mrf.mxu0
        %v2670 = vadd.f32 0.0, %v2669
        %v2671 = vpop.f32.mrf.mxu0
        %2672 = vmatprep.mubr.f32.mxu0 0.0
        %2673 = vmatmul.mubr.f32.gmra.mxu0 %v1990
        %v2674 = vpop.f32.mrf.mxu0
        %v2675 = vadd.f32 0.0, %v2674
        %v2676 = vpop.f32.mrf.mxu0
        %2677 = vmatprep.mubr.f32.mxu0 0.0
        %2678 = vmatmul.mubr.f32.gmra.mxu0 %v1993
        %v2679 = vpop.f32.mrf.mxu0
        %v2680 = vadd.f32 0.0, %v2679
        %v2681 = vpop.f32.mrf.mxu0
        %2682 = vmatprep.mubr.f32.mxu0 0.0
        %2683 = vmatmul.mubr.f32.gmra.mxu0 %v1996
        %v2684 = vpop.f32.mrf.mxu0
        %v2685 = vadd.f32 0.0, %v2684
        %v2686 = vpop.f32.mrf.mxu0
        %2687 = vmatprep.mubr.f32.mxu0 0.0
        %2688 = vmatmul.mubr.f32.gmra.mxu0 %v1999
        %v2689 = vpop.f32.mrf.mxu0
        %v2690 = vadd.f32 0.0, %v2689
        %v2691 = vpop.f32.mrf.mxu0
        %2692 = vmatprep.mubr.f32.mxu0 0.0
        %2693 = vmatmul.mubr.f32.gmra.mxu0 %v2002
        %v2694 = vpop.f32.mrf.mxu0
        %v2695 = vadd.f32 0.0, %v2694
        %v2696 = vpop.f32.mrf.mxu0
        %2697 = vmatprep.mubr.f32.mxu0 0.0
        %2698 = vmatmul.mubr.f32.gmra.mxu0 %v2005
        %v2699 = vpop.f32.mrf.mxu0
        %v2700 = vadd.f32 0.0, %v2699
        %v2701 = vpop.f32.mrf.mxu0
        %2702 = vmatprep.mubr.f32.mxu0 0.0
        %2703 = vmatmul.mubr.f32.gmra.mxu0 %v2008
        %v2704 = vpop.f32.mrf.mxu0
        %v2705 = vadd.f32 0.0, %v2704
        %v2706 = vpop.f32.mrf.mxu0
        %2707 = vmatprep.mubr.f32.mxu0 0.0
        %2708 = vmatmul.mubr.f32.gmra.mxu0 %v2011
        %v2709 = vpop.f32.mrf.mxu0
        %v2710 = vadd.f32 0.0, %v2709
        %v2711 = vpop.f32.mrf.mxu0
        %2712 = vmatprep.mubr.f32.mxu0 0.0
        %2713 = vmatmul.mubr.f32.gmra.mxu0 %v2014
        %v2714 = vpop.f32.mrf.mxu0
        %v2715 = vadd.f32 0.0, %v2714
        %v2716 = vpop.f32.mrf.mxu0
        %2717 = vmatprep.mubr.f32.mxu0 0.0
        %2718 = vmatmul.mubr.f32.gmra.mxu0 %v2017
        %v2719 = vpop.f32.mrf.mxu0
        %v2720 = vadd.f32 0.0, %v2719
        %v2721 = vpop.f32.mrf.mxu0
        %2722 = vmatprep.mubr.f32.mxu0 0.0
        %2723 = vmatmul.mubr.f32.gmra.mxu0 %v2020
        %v2724 = vpop.f32.mrf.mxu0
        %v2725 = vadd.f32 0.0, %v2724
        %v2726 = vpop.f32.mrf.mxu0
        %2727 = vmatprep.mubr.f32.mxu0 0.0
        %2728 = vmatmul.mubr.f32.gmra.mxu0 %v2023
        %v2729 = vpop.f32.mrf.mxu0
        %v2730 = vadd.f32 0.0, %v2729
        %v2731 = vpop.f32.mrf.mxu0
        %2732 = vdwg.mxu0
        %v2733 = vadd.f32 %v2095, %v874
        %v2734 = vadd.f32 %v2100, %v879
        %v2735 = vadd.f32 %v2105, %v884
        %v2736 = vadd.f32 %v2110, %v889
        %v2737 = vadd.f32 %v2115, %v894
        %v2738 = vadd.f32 %v2120, %v899
        %v2739 = vadd.f32 %v2125, %v904
        %v2740 = vadd.f32 %v2130, %v909
        %v2741 = vadd.f32 %v2135, %v914
        %v2742 = vadd.f32 %v2140, %v919
        %v2743 = vadd.f32 %v2145, %v924
        %v2744 = vadd.f32 %v2150, %v929
        %v2745 = vadd.f32 %v2155, %v934
        %v2746 = vadd.f32 %v2160, %v939
        %v2747 = vadd.f32 %v2165, %v944
        %v2748 = vadd.f32 %v2170, %v949
        %v2749 = vadd.f32 %v2175, %v954
        %v2750 = vadd.f32 %v2180, %v959
        %v2751 = vadd.f32 %v2185, %v964
        %v2752 = vadd.f32 %v2190, %v969
        %v2753 = vadd.f32 %v2195, %v974
        %v2754 = vadd.f32 %v2200, %v979
        %v2755 = vadd.f32 %v2205, %v984
        %v2756 = vadd.f32 %v2210, %v989
        %v2757 = vadd.f32 %v2215, %v994
        %v2758 = vadd.f32 %v2220, %v999
        %v2759 = vadd.f32 %v2225, %v1004
        %v2760 = vadd.f32 %v2230, %v1009
        %v2761 = vadd.f32 %v2235, %v1014
        %v2762 = vadd.f32 %v2240, %v1019
        %v2763 = vadd.f32 %v2245, %v1024
        %v2764 = vadd.f32 %v2250, %v1029
        %v2765 = vadd.f32 %v2255, %v1034
        %v2766 = vadd.f32 %v2260, %v1039
        %v2767 = vadd.f32 %v2265, %v1044
        %v2768 = vadd.f32 %v2270, %v1049
        %v2769 = vadd.f32 %v2275, %v1054
        %v2770 = vadd.f32 %v2280, %v1059
        %v2771 = vadd.f32 %v2285, %v1064
        %v2772 = vadd.f32 %v2290, %v1069
        %v2773 = vadd.f32 %v2295, %v1074
        %v2774 = vadd.f32 %v2300, %v1079
        %v2775 = vadd.f32 %v2305, %v1084
        %v2776 = vadd.f32 %v2310, %v1089
        %v2777 = vadd.f32 %v2315, %v1094
        %v2778 = vadd.f32 %v2320, %v1099
        %v2779 = vadd.f32 %v2325, %v1104
        %v2780 = vadd.f32 %v2330, %v1109
        %v2781 = vadd.f32 %v2335, %v1114
        %v2782 = vadd.f32 %v2340, %v1119
        %v2783 = vadd.f32 %v2345, %v1124
        %v2784 = vadd.f32 %v2350, %v1129
        %v2785 = vadd.f32 %v2355, %v1134
        %v2786 = vadd.f32 %v2360, %v1139
        %v2787 = vadd.f32 %v2365, %v1144
        %v2788 = vadd.f32 %v2370, %v1149
        %v2789 = vadd.f32 %v2375, %v1154
        %v2790 = vadd.f32 %v2380, %v1159
        %v2791 = vadd.f32 %v2385, %v1164
        %v2792 = vadd.f32 %v2390, %v1169
        %v2793 = vadd.f32 %v2395, %v1174
        %v2794 = vadd.f32 %v2400, %v1179
        %v2795 = vadd.f32 %v2405, %v1184
        %v2796 = vadd.f32 %v2410, %v1189
        %v2797 = vadd.f32 %v2415, %v1194
        %v2798 = vadd.f32 %v2420, %v1199
        %v2799 = vadd.f32 %v2425, %v1204
        %v2800 = vadd.f32 %v2430, %v1209
        %v2801 = vadd.f32 %v2435, %v1214
        %v2802 = vadd.f32 %v2440, %v1219
        %v2803 = vadd.f32 %v2445, %v1224
        %v2804 = vadd.f32 %v2450, %v1229
        %v2805 = vadd.f32 %v2455, %v1234
        %v2806 = vadd.f32 %v2460, %v1239
        %v2807 = vadd.f32 %v2465, %v1244
        %v2808 = vadd.f32 %v2470, %v1249
        %v2809 = vadd.f32 %v2475, %v1254
        %v2810 = vadd.f32 %v2480, %v1259
        %v2811 = vadd.f32 %v2485, %v1264
        %v2812 = vadd.f32 %v2490, %v1269
        %v2813 = vadd.f32 %v2495, %v1274
        %v2814 = vadd.f32 %v2500, %v1279
        %v2815 = vadd.f32 %v2505, %v1284
        %v2816 = vadd.f32 %v2510, %v1289
        %v2817 = vadd.f32 %v2515, %v1294
        %v2818 = vadd.f32 %v2520, %v1299
        %v2819 = vadd.f32 %v2525, %v1304
        %v2820 = vadd.f32 %v2530, %v1309
        %v2821 = vadd.f32 %v2535, %v1314
        %v2822 = vadd.f32 %v2540, %v1319
        %v2823 = vadd.f32 %v2545, %v1324
        %v2824 = vadd.f32 %v2550, %v1329
        %v2825 = vadd.f32 %v2555, %v1334
        %v2826 = vadd.f32 %v2560, %v1339
        %v2827 = vadd.f32 %v2565, %v1344
        %v2828 = vadd.f32 %v2570, %v1349
        %v2829 = vadd.f32 %v2575, %v1354
        %v2830 = vadd.f32 %v2580, %v1359
        %v2831 = vadd.f32 %v2585, %v1364
        %v2832 = vadd.f32 %v2590, %v1369
        %v2833 = vadd.f32 %v2595, %v1374
        %v2834 = vadd.f32 %v2600, %v1379
        %v2835 = vadd.f32 %v2605, %v1384
        %v2836 = vadd.f32 %v2610, %v1389
        %v2837 = vadd.f32 %v2615, %v1394
        %v2838 = vadd.f32 %v2620, %v1399
        %v2839 = vadd.f32 %v2625, %v1404
        %v2840 = vadd.f32 %v2630, %v1409
        %v2841 = vadd.f32 %v2635, %v1414
        %v2842 = vadd.f32 %v2640, %v1419
        %v2843 = vadd.f32 %v2645, %v1424
        %v2844 = vadd.f32 %v2650, %v1429
        %v2845 = vadd.f32 %v2655, %v1434
        %v2846 = vadd.f32 %v2660, %v1439
        %v2847 = vadd.f32 %v2665, %v1444
        %v2848 = vadd.f32 %v2670, %v1449
        %v2849 = vadd.f32 %v2675, %v1454
        %v2850 = vadd.f32 %v2680, %v1459
        %v2851 = vadd.f32 %v2685, %v1464
        %v2852 = vadd.f32 %v2690, %v1469
        %v2853 = vadd.f32 %v2695, %v1474
        %v2854 = vadd.f32 %v2700, %v1479
        %v2855 = vadd.f32 %v2705, %v1484
        %v2856 = vadd.f32 %v2710, %v1489
        %v2857 = vadd.f32 %v2715, %v1494
        %v2858 = vadd.f32 %v2720, %v1499
        %v2859 = vadd.f32 %v2725, %v1504
        %v2860 = vadd.f32 %v2730, %v1509
        %vm2861 = vcmask 64512
        %v2862 = vsel %vm2861, %v2733, -inf
        %v2863 = vsel %vm2861, %v2749, -inf
        %v2864 = vmax.f32 %v2862, %v2863
        %v2865 = vsel %vm2861, %v2765, -inf
        %v2866 = vmax.f32 %v2864, %v2865
        %v2867 = vsel %vm2861, %v2781, -inf
        %v2868 = vmax.f32 %v2866, %v2867
        %v2869 = vsel %vm2861, %v2797, -inf
        %v2870 = vmax.f32 %v2868, %v2869
        %v2871 = vsel %vm2861, %v2813, -inf
        %v2872 = vmax.f32 %v2870, %v2871
        %v2873 = vsel %vm2861, %v2829, -inf
        %v2874 = vmax.f32 %v2872, %v2873
        %v2875 = vsel %vm2861, %v2845, -inf
        %v2876 = vmax.f32 %v2874, %v2875
        %v2877 = vsel %vm2861, %v2734, -inf
        %v2878 = vsel %vm2861, %v2750, -inf
        %v2879 = vmax.f32 %v2877, %v2878
        %v2880 = vsel %vm2861, %v2766, -inf
        %v2881 = vmax.f32 %v2879, %v2880
        %v2882 = vsel %vm2861, %v2782, -inf
        %v2883 = vmax.f32 %v2881, %v2882
        %v2884 = vsel %vm2861, %v2798, -inf
        %v2885 = vmax.f32 %v2883, %v2884
        %v2886 = vsel %vm2861, %v2814, -inf
        %v2887 = vmax.f32 %v2885, %v2886
        %v2888 = vsel %vm2861, %v2830, -inf
        %v2889 = vmax.f32 %v2887, %v2888
        %v2890 = vsel %vm2861, %v2846, -inf
        %v2891 = vmax.f32 %v2889, %v2890
        %v2892 = vsel %vm2861, %v2735, -inf
        %v2893 = vsel %vm2861, %v2751, -inf
        %v2894 = vmax.f32 %v2892, %v2893
        %v2895 = vsel %vm2861, %v2767, -inf
        %v2896 = vmax.f32 %v2894, %v2895
        %v2897 = vsel %vm2861, %v2783, -inf
        %v2898 = vmax.f32 %v2896, %v2897
        %v2899 = vsel %vm2861, %v2799, -inf
        %v2900 = vmax.f32 %v2898, %v2899
        %v2901 = vsel %vm2861, %v2815, -inf
        %v2902 = vmax.f32 %v2900, %v2901
        %v2903 = vsel %vm2861, %v2831, -inf
        %v2904 = vmax.f32 %v2902, %v2903
        %v2905 = vsel %vm2861, %v2847, -inf
        %v2906 = vmax.f32 %v2904, %v2905
        %v2907 = vsel %vm2861, %v2736, -inf
        %v2908 = vsel %vm2861, %v2752, -inf
        %v2909 = vmax.f32 %v2907, %v2908
        %v2910 = vsel %vm2861, %v2768, -inf
        %v2911 = vmax.f32 %v2909, %v2910
        %v2912 = vsel %vm2861, %v2784, -inf
        %v2913 = vmax.f32 %v2911, %v2912
        %v2914 = vsel %vm2861, %v2800, -inf
        %v2915 = vmax.f32 %v2913, %v2914
        %v2916 = vsel %vm2861, %v2816, -inf
        %v2917 = vmax.f32 %v2915, %v2916
        %v2918 = vsel %vm2861, %v2832, -inf
        %v2919 = vmax.f32 %v2917, %v2918
        %v2920 = vsel %vm2861, %v2848, -inf
        %v2921 = vmax.f32 %v2919, %v2920
        %v2922 = vsel %vm2861, %v2737, -inf
        %v2923 = vsel %vm2861, %v2753, -inf
        %v2924 = vmax.f32 %v2922, %v2923
        %v2925 = vsel %vm2861, %v2769, -inf
        %v2926 = vmax.f32 %v2924, %v2925
        %v2927 = vsel %vm2861, %v2785, -inf
        %v2928 = vmax.f32 %v2926, %v2927
        %v2929 = vsel %vm2861, %v2801, -inf
        %v2930 = vmax.f32 %v2928, %v2929
        %v2931 = vsel %vm2861, %v2817, -inf
        %v2932 = vmax.f32 %v2930, %v2931
        %v2933 = vsel %vm2861, %v2833, -inf
        %v2934 = vmax.f32 %v2932, %v2933
        %v2935 = vsel %vm2861, %v2849, -inf
        %v2936 = vmax.f32 %v2934, %v2935
        %v2937 = vsel %vm2861, %v2738, -inf
        %v2938 = vsel %vm2861, %v2754, -inf
        %v2939 = vmax.f32 %v2937, %v2938
        %v2940 = vsel %vm2861, %v2770, -inf
        %v2941 = vmax.f32 %v2939, %v2940
        %v2942 = vsel %vm2861, %v2786, -inf
        %v2943 = vmax.f32 %v2941, %v2942
        %v2944 = vsel %vm2861, %v2802, -inf
        %v2945 = vmax.f32 %v2943, %v2944
        %v2946 = vsel %vm2861, %v2818, -inf
        %v2947 = vmax.f32 %v2945, %v2946
        %v2948 = vsel %vm2861, %v2834, -inf
        %v2949 = vmax.f32 %v2947, %v2948
        %v2950 = vsel %vm2861, %v2850, -inf
        %v2951 = vmax.f32 %v2949, %v2950
        %v2952 = vsel %vm2861, %v2739, -inf
        %v2953 = vsel %vm2861, %v2755, -inf
        %v2954 = vmax.f32 %v2952, %v2953
        %v2955 = vsel %vm2861, %v2771, -inf
        %v2956 = vmax.f32 %v2954, %v2955
        %v2957 = vsel %vm2861, %v2787, -inf
        %v2958 = vmax.f32 %v2956, %v2957
        %v2959 = vsel %vm2861, %v2803, -inf
        %v2960 = vmax.f32 %v2958, %v2959
        %v2961 = vsel %vm2861, %v2819, -inf
        %v2962 = vmax.f32 %v2960, %v2961
        %v2963 = vsel %vm2861, %v2835, -inf
        %v2964 = vmax.f32 %v2962, %v2963
        %v2965 = vsel %vm2861, %v2851, -inf
        %v2966 = vmax.f32 %v2964, %v2965
        %v2967 = vsel %vm2861, %v2740, -inf
        %v2968 = vsel %vm2861, %v2756, -inf
        %v2969 = vmax.f32 %v2967, %v2968
        %v2970 = vsel %vm2861, %v2772, -inf
        %v2971 = vmax.f32 %v2969, %v2970
        %v2972 = vsel %vm2861, %v2788, -inf
        %v2973 = vmax.f32 %v2971, %v2972
        %v2974 = vsel %vm2861, %v2804, -inf
        %v2975 = vmax.f32 %v2973, %v2974
        %v2976 = vsel %vm2861, %v2820, -inf
        %v2977 = vmax.f32 %v2975, %v2976
        %v2978 = vsel %vm2861, %v2836, -inf
        %v2979 = vmax.f32 %v2977, %v2978
        %v2980 = vsel %vm2861, %v2852, -inf
        %v2981 = vmax.f32 %v2979, %v2980
        %v2982 = vsel %vm2861, %v2741, -inf
        %v2983 = vsel %vm2861, %v2757, -inf
        %v2984 = vmax.f32 %v2982, %v2983
        %v2985 = vsel %vm2861, %v2773, -inf
        %v2986 = vmax.f32 %v2984, %v2985
        %v2987 = vsel %vm2861, %v2789, -inf
        %v2988 = vmax.f32 %v2986, %v2987
        %v2989 = vsel %vm2861, %v2805, -inf
        %v2990 = vmax.f32 %v2988, %v2989
        %v2991 = vsel %vm2861, %v2821, -inf
        %v2992 = vmax.f32 %v2990, %v2991
        %v2993 = vsel %vm2861, %v2837, -inf
        %v2994 = vmax.f32 %v2992, %v2993
        %v2995 = vsel %vm2861, %v2853, -inf
        %v2996 = vmax.f32 %v2994, %v2995
        %v2997 = vsel %vm2861, %v2742, -inf
        %v2998 = vsel %vm2861, %v2758, -inf
        %v2999 = vmax.f32 %v2997, %v2998
        %v3000 = vsel %vm2861, %v2774, -inf
        %v3001 = vmax.f32 %v2999, %v3000
        %v3002 = vsel %vm2861, %v2790, -inf
        %v3003 = vmax.f32 %v3001, %v3002
        %v3004 = vsel %vm2861, %v2806, -inf
        %v3005 = vmax.f32 %v3003, %v3004
        %v3006 = vsel %vm2861, %v2822, -inf
        %v3007 = vmax.f32 %v3005, %v3006
        %v3008 = vsel %vm2861, %v2838, -inf
        %v3009 = vmax.f32 %v3007, %v3008
        %v3010 = vsel %vm2861, %v2854, -inf
        %v3011 = vmax.f32 %v3009, %v3010
        %v3012 = vsel %vm2861, %v2743, -inf
        %v3013 = vsel %vm2861, %v2759, -inf
        %v3014 = vmax.f32 %v3012, %v3013
        %v3015 = vsel %vm2861, %v2775, -inf
        %v3016 = vmax.f32 %v3014, %v3015
        %v3017 = vsel %vm2861, %v2791, -inf
        %v3018 = vmax.f32 %v3016, %v3017
        %v3019 = vsel %vm2861, %v2807, -inf
        %v3020 = vmax.f32 %v3018, %v3019
        %v3021 = vsel %vm2861, %v2823, -inf
        %v3022 = vmax.f32 %v3020, %v3021
        %v3023 = vsel %vm2861, %v2839, -inf
        %v3024 = vmax.f32 %v3022, %v3023
        %v3025 = vsel %vm2861, %v2855, -inf
        %v3026 = vmax.f32 %v3024, %v3025
        %v3027 = vsel %vm2861, %v2744, -inf
        %v3028 = vsel %vm2861, %v2760, -inf
        %v3029 = vmax.f32 %v3027, %v3028
        %v3030 = vsel %vm2861, %v2776, -inf
        %v3031 = vmax.f32 %v3029, %v3030
        %v3032 = vsel %vm2861, %v2792, -inf
        %v3033 = vmax.f32 %v3031, %v3032
        %v3034 = vsel %vm2861, %v2808, -inf
        %v3035 = vmax.f32 %v3033, %v3034
        %v3036 = vsel %vm2861, %v2824, -inf
        %v3037 = vmax.f32 %v3035, %v3036
        %v3038 = vsel %vm2861, %v2840, -inf
        %v3039 = vmax.f32 %v3037, %v3038
        %v3040 = vsel %vm2861, %v2856, -inf
        %v3041 = vmax.f32 %v3039, %v3040
        %v3042 = vsel %vm2861, %v2745, -inf
        %v3043 = vsel %vm2861, %v2761, -inf
        %v3044 = vmax.f32 %v3042, %v3043
        %v3045 = vsel %vm2861, %v2777, -inf
        %v3046 = vmax.f32 %v3044, %v3045
        %v3047 = vsel %vm2861, %v2793, -inf
        %v3048 = vmax.f32 %v3046, %v3047
        %v3049 = vsel %vm2861, %v2809, -inf
        %v3050 = vmax.f32 %v3048, %v3049
        %v3051 = vsel %vm2861, %v2825, -inf
        %v3052 = vmax.f32 %v3050, %v3051
        %v3053 = vsel %vm2861, %v2841, -inf
        %v3054 = vmax.f32 %v3052, %v3053
        %v3055 = vsel %vm2861, %v2857, -inf
        %v3056 = vmax.f32 %v3054, %v3055
        %v3057 = vsel %vm2861, %v2746, -inf
        %v3058 = vsel %vm2861, %v2762, -inf
        %v3059 = vmax.f32 %v3057, %v3058
        %v3060 = vsel %vm2861, %v2778, -inf
        %v3061 = vmax.f32 %v3059, %v3060
        %v3062 = vsel %vm2861, %v2794, -inf
        %v3063 = vmax.f32 %v3061, %v3062
        %v3064 = vsel %vm2861, %v2810, -inf
        %v3065 = vmax.f32 %v3063, %v3064
        %v3066 = vsel %vm2861, %v2826, -inf
        %v3067 = vmax.f32 %v3065, %v3066
        %v3068 = vsel %vm2861, %v2842, -inf
        %v3069 = vmax.f32 %v3067, %v3068
        %v3070 = vsel %vm2861, %v2858, -inf
        %v3071 = vmax.f32 %v3069, %v3070
        %v3072 = vsel %vm2861, %v2747, -inf
        %v3073 = vsel %vm2861, %v2763, -inf
        %v3074 = vmax.f32 %v3072, %v3073
        %v3075 = vsel %vm2861, %v2779, -inf
        %v3076 = vmax.f32 %v3074, %v3075
        %v3077 = vsel %vm2861, %v2795, -inf
        %v3078 = vmax.f32 %v3076, %v3077
        %v3079 = vsel %vm2861, %v2811, -inf
        %v3080 = vmax.f32 %v3078, %v3079
        %v3081 = vsel %vm2861, %v2827, -inf
        %v3082 = vmax.f32 %v3080, %v3081
        %v3083 = vsel %vm2861, %v2843, -inf
        %v3084 = vmax.f32 %v3082, %v3083
        %v3085 = vsel %vm2861, %v2859, -inf
        %v3086 = vmax.f32 %v3084, %v3085
        %v3087 = vsel %vm2861, %v2748, -inf
        %v3088 = vsel %vm2861, %v2764, -inf
        %v3089 = vmax.f32 %v3087, %v3088
        %v3090 = vsel %vm2861, %v2780, -inf
        %v3091 = vmax.f32 %v3089, %v3090
        %v3092 = vsel %vm2861, %v2796, -inf
        %v3093 = vmax.f32 %v3091, %v3092
        %v3094 = vsel %vm2861, %v2812, -inf
        %v3095 = vmax.f32 %v3093, %v3094
        %v3096 = vsel %vm2861, %v2828, -inf
        %v3097 = vmax.f32 %v3095, %v3096
        %v3098 = vsel %vm2861, %v2844, -inf
        %v3099 = vmax.f32 %v3097, %v3098
        %v3100 = vsel %vm2861, %v2860, -inf
        %v3101 = vmax.f32 %v3099, %v3100
        %v3102 = vld [vmem:[%s4] sm:$0x1]
        %v3104 = vlaneseq
        %v3105 = vshrl.u32 %v3104, 7
        %v3106 = vsub.s32 0, %v3105
        %v3107 = vrot.slane %v3102, %v3106
        %v3109 = vadd.f32 %v2876, %v3107
        %v3110 = vadd.f32 %v2891, %v3107
        %v3111 = vadd.f32 %v2906, %v3107
        %v3112 = vadd.f32 %v2921, %v3107
        %v3113 = vadd.f32 %v2936, %v3107
        %v3114 = vadd.f32 %v2951, %v3107
        %v3115 = vadd.f32 %v2966, %v3107
        %v3116 = vadd.f32 %v2981, %v3107
        %v3117 = vadd.f32 %v2996, %v3107
        %v3118 = vadd.f32 %v3011, %v3107
        %v3119 = vadd.f32 %v3026, %v3107
        %v3120 = vadd.f32 %v3041, %v3107
        %v3121 = vadd.f32 %v3056, %v3107
        %v3122 = vadd.f32 %v3071, %v3107
        %v3123 = vadd.f32 %v3086, %v3107
        %v3124 = vadd.f32 %v3101, %v3107
        %v3125 = vmax.f32 %v3109, 0.0
        %v3126 = vmax.f32 %v3110, 0.0
        %v3127 = vmax.f32 %v3111, 0.0
        %v3128 = vmax.f32 %v3112, 0.0
        %v3129 = vmax.f32 %v3113, 0.0
        %v3130 = vmax.f32 %v3114, 0.0
        %v3131 = vmax.f32 %v3115, 0.0
        %v3132 = vmax.f32 %v3116, 0.0
        %v3133 = vmax.f32 %v3117, 0.0
        %v3134 = vmax.f32 %v3118, 0.0
        %v3135 = vmax.f32 %v3119, 0.0
        %v3136 = vmax.f32 %v3120, 0.0
        %v3137 = vmax.f32 %v3121, 0.0
        %v3138 = vmax.f32 %v3122, 0.0
        %v3139 = vmax.f32 %v3123, 0.0
        %v3140 = vmax.f32 %v3124, 0.0
        %3141 = vxpose.xlu0.b32.start [1/16] %v3125, 128
        %3142 = vxpose.xlu0.b32.cont [2/16] %v3126, 128
        %3143 = vxpose.xlu0.b32.cont [3/16] %v3127, 128
        %3144 = vxpose.xlu0.b32.cont [4/16] %v3128, 128
        %3145 = vxpose.xlu0.b32.cont [5/16] %v3129, 128
        %3146 = vxpose.xlu0.b32.cont [6/16] %v3130, 128
        %3147 = vxpose.xlu0.b32.cont [7/16] %v3131, 128
        %3148 = vxpose.xlu0.b32.cont [8/16] %v3132, 128
        %3149 = vxpose.xlu0.b32.cont [9/16] %v3133, 128
        %3150 = vxpose.xlu0.b32.cont [10/16] %v3134, 128
        %3151 = vxpose.xlu0.b32.cont [11/16] %v3135, 128
        %3152 = vxpose.xlu0.b32.cont [12/16] %v3136, 128
        %3153 = vxpose.xlu0.b32.cont [13/16] %v3137, 128
        %3154 = vxpose.xlu0.b32.cont [14/16] %v3138, 128
        %3155 = vxpose.xlu0.b32.cont [15/16] %v3139, 128
        %3156 = vxpose.xlu0.b32.end [16/16] %v3140, 128
        %v3157 = vpop.trf.xlu0
        %v3158 = vpop.trf.xlu0
        %v3159 = vpop.trf.xlu0
        %v3160 = vpop.trf.xlu0
        %v3161 = vpop.trf.xlu0
        %v3162 = vpop.trf.xlu0
        %v3163 = vpop.trf.xlu0
        %v3164 = vpop.trf.xlu0
        %v3165 = vpop.trf.xlu0
        %v3166 = vpop.trf.xlu0
        %v3167 = vpop.trf.xlu0
        %v3168 = vpop.trf.xlu0
        %v3169 = vpop.trf.xlu0
        %v3170 = vpop.trf.xlu0
        %v3171 = vpop.trf.xlu0
        %v3172 = vpop.trf.xlu0
        %3173 = vst [vmem:[%s268] sm:$0xff] %v3157
        %s3174 = sand.u32 %s160, 1
        %s3175 = scalar_lea.sflag [#allocation3], %s3174
        %s3176 = sand.u32 %s160, 1
        %s3177 = smul.addr %s3176, 8
        %s3178 = scalar_lea.vmem [#allocation2], %s3177
        // Predicated region
        $region41: #{tpu_custom_call.1} parent=39 // pred_check
          %p3179 = pneg %p170
        $region42: #{tpu_custom_call.1} parent=39 // pred_check_branch
          %3181 = sbr.rel (%p3179) target = $region44
        $region43: #{tpu_custom_call.1} parent=39 // pred_region
          %s3183 = ssub.s32 128, 128
          %3184 = vsyncadd %s3175, %s3183
          %s3185 = sadd.s32 %s23, %s24
          %s3186 = smul.addr %s3185, 128
          %s3187 = scalar_lea.hbm %s5, %s3186
          %s3189 = sshll.u32 %s3178, 4
          %s3190 = int_to_ptr.vmem [resolvable:$true] %s3189
          %3192 = dma.vmem_to_hbm [thread:$0]  %s3190, 128, %s3187, %s3175
        $region44: #{tpu_custom_call.1} parent=39 // pred_fallthru
          _
      $region40: #{tpu_custom_call.1} parent=5 // pred_fallthru
        _
      %p3193 = scmp.le.s32.totalorder 2, %s14
      // Predicated region
      $region45: #{tpu_custom_call.1} parent=5 // pred_check
        %p3194 = pneg %p3193
      $region46: #{tpu_custom_call.1} parent=5 // pred_check_branch
        %3196 = sbr.rel (%p3194) target = $region48
      $region47: #{tpu_custom_call.1} parent=5 // pred_region
        %s3197 = ssub.s32 %s14, 2
        // Predicated region
        $region49: #{tpu_custom_call.1} parent=47 // pred_check
          %p3198 = pneg %p176
        $region50: #{tpu_custom_call.1} parent=47 // pred_check_branch
          %3200 = sbr.rel (%p3198) target = $region52
        $region51: #{tpu_custom_call.1} parent=47 // pred_region
          %s3201 = sand.u32 %s161, 1
          %s3202 = scalar_lea.sflag [#allocation3], %s3201
          %s3203 = sand.u32 %s161, 1
          %s3204 = smul.addr %s3203, 8
          %s3205 = scalar_lea.vmem [#allocation2], %s3204
          %3206 = dma.done %s3202, 128
        $region52: #{tpu_custom_call.1} parent=47 // pred_fallthru
          _
      $region48: #{tpu_custom_call.1} parent=5 // pred_fallthru
        _
    $region6: #{tpu_custom_call.1} parent=1 // loop_footer
      %s18 = sadd.s32 1, %s14
    $region7: #{tpu_custom_call.1} parent=1 // loop_footer_branch
      %13 = sbr.rel target = $region3
    $region8: #{tpu_custom_call.1} parent=1 // loop_exit
      _
    %3207 = vsyncpa [#allocation3], 1
    %s3208 = scalar_lea.sflag [#allocation3], 1
    %3209 = vsyncpa %s3208, 1

</llo_original>
